<compile_context>
chip_gen: v6e
topology: v6e:2x2x1
jax: 0.10.0
libtpu: 0.0.40
codegen_flags: <defaults>
</compile_context>

<pallas_src>
import jax
import jax.numpy as jnp
from jax.experimental import pallas as pl
from jax.experimental.pallas import tpu as pltpu

# ----------------------------- config -----------------------------
VOCAB = 50      # input_size
EMSIZE = 32     # config.emsize
NHID = 32       # config.nhid
NLAYERS = 1     # config.nlayers
BATCH = 2
SEQ = 8
# TODO(synk): dropout is identity here (p=0.0 / eval mode); training-mode
# stochastic dropout is not implemented (the algebraic folds rely on it).


# ----------------------- fused encoder kernel ----------------------
def _encoder_kernel(tok_ref, gtab_ref, whh_ref, h0_ref, c0_ref,
                    out_ref, hn_ref, cn_ref, gx_ref):
    # tok_ref:  (B, T)      int32, SMEM
    # gtab_ref: (VOCAB, 4H) f32,  VMEM  -- precomputed per-token input gates
    # whh_ref:  (H, 4H)     f32,  VMEM  -- LSTM hidden weight (pre-transposed)
    # h0/c0:    (B, H)
    # out_ref:  (B, T*H)    lane-dense output slab
    # hn/cn:    (B, H)
    # gx_ref:   (T*B, 4H)   VMEM scratch (time-major gathered gates)
    B, H = h0_ref.shape
    T = out_ref.shape[1] // H

    # --- in-kernel embedding->projection->input-gate "gather" prologue ---
    # gate_table[r] == emb[r] @ Wp^T @ Wih^T + bp @ Wih^T + b_ih + b_hh
    # (all folded at pack time), so the entire pre-recurrence compute is a
    # 16-row gather by token id: zero MXU work before the serial loop.
    for t in range(T):
        for b in range(B):
            tok = tok_ref[b, t]
            gx_ref[pl.ds(t * B + b, 1), :] = gtab_ref[pl.ds(tok, 1), :]

    gates_x = gx_ref[...]          # (T*B, 4H), time-major
    whh = whh_ref[...]             # loaded once, reused across all T steps
    h = h0_ref[...]
    c = c0_ref[...]

    # --- sequential recurrence, fully unrolled (T static & small) ---
    for t in range(T):
        gates = gates_x[t * B:(t + 1) * B, :] + jnp.dot(
            h, whh, preferred_element_type=jnp.float32)       # (B, 4H)

        # 2 full-width EUP passes, then static lane slices (i, f, g, o order)
        sg = jax.nn.sigmoid(gates)
        th = jnp.tanh(gates)
        ig = sg[:, 0 * H:1 * H]
        fg = sg[:, 1 * H:2 * H]
        gg = th[:, 2 * H:3 * H]
        og = sg[:, 3 * H:4 * H]

        c = fg * c + ig * gg
        h = og * jnp.tanh(c)

        out_ref[:, t * H:(t + 1) * H] = h.astype(out_ref.dtype)

    # final state written exactly once
    hn_ref[...] = h.astype(hn_ref.dtype)
    cn_ref[...] = c.astype(cn_ref.dtype)


def fused_encoder_core(tokens, gate_table, whh_t, h0, c0):
    """tokens: (B, T) int32. Returns (out_slab (B,T*H), h_n (B,H), c_n (B,H))."""
    B, T = tokens.shape
    _, H = h0.shape
    G = gate_table.shape[1]  # 4H

    flops = 2 * T * B * H * G + 12 * T * B * G          # recurrence matmuls + VPU
    transcendentals = T * (2 * B * G + B * H)            # sigmoid/tanh passes
    bytes_accessed = 4 * (tokens.size + gate_table.size + whh_t.size
                          + 4 * B * H + B * T * H)

    return pl.pallas_call(
        _encoder_kernel,
        in_specs=[
            pl.BlockSpec(memory_space=pltpu.MemorySpace.SMEM),   # tokens
            pl.BlockSpec(memory_space=pltpu.MemorySpace.VMEM),   # gate_table
            pl.BlockSpec(memory_space=pltpu.MemorySpace.VMEM),   # whh_t
            pl.BlockSpec(memory_space=pltpu.MemorySpace.VMEM),   # h0
            pl.BlockSpec(memory_space=pltpu.MemorySpace.VMEM),   # c0
        ],
        out_specs=(
            pl.BlockSpec(memory_space=pltpu.MemorySpace.VMEM),
            pl.BlockSpec(memory_space=pltpu.MemorySpace.VMEM),
            pl.BlockSpec(memory_space=pltpu.MemorySpace.VMEM),
        ),
        out_shape=(
            jax.ShapeDtypeStruct((B, T * H), jnp.float32),   # lane-dense slab
            jax.ShapeDtypeStruct((B, H), jnp.float32),       # h_n
            jax.ShapeDtypeStruct((B, H), jnp.float32),       # c_n
        ),
        scratch_shapes=[pltpu.VMEM((T * B, G), jnp.float32)],
        cost_estimate=pl.CostEstimate(flops=flops,
                                      transcendentals=transcendentals,
                                      bytes_accessed=bytes_accessed),
    )(tokens, gate_table, whh_t, h0, c0)


# ------------------------- parameter setup -------------------------
def init_params(key):
    ks = jax.random.split(key, 7)
    scale = 0.1
    return {
        "emb":    scale * jax.random.normal(ks[0], (VOCAB, EMSIZE), jnp.float32),
        "w_proj": scale * jax.random.normal(ks[1], (EMSIZE, EMSIZE), jnp.float32),
        "b_proj": scale * jax.random.normal(ks[2], (EMSIZE,), jnp.float32),
        "w_ih":   scale * jax.random.normal(ks[3], (4 * NHID, EMSIZE), jnp.float32),
        "w_hh":   scale * jax.random.normal(ks[4], (4 * NHID, NHID), jnp.float32),
        "b_ih":   scale * jax.random.normal(ks[5], (4 * NHID,), jnp.float32),
        "b_hh":   scale * jax.random.normal(ks[6], (4 * NHID,), jnp.float32),
    }


def pack_params(p):
    """Algebraic folding done ONCE at pack time (valid because dropout p=0):
       W_xg       = W_proj^T @ W_ih^T
       b_g        = b_proj @ W_ih^T + b_ih + b_hh
       gate_table = Emb @ W_xg + b_g          (VOCAB, 4H)  ~25 KB f32
    """
    w_ih_t = p["w_ih"].T                                  # (E, 4H)
    w_xg = p["w_proj"].T @ w_ih_t                         # (E, 4H)
    b_g = p["b_proj"] @ w_ih_t + p["b_ih"] + p["b_hh"]    # (4H,)
    gate_table = p["emb"] @ w_xg + b_g[None, :]           # (VOCAB, 4H)
    return {
        "gate_table": jnp.asarray(gate_table, jnp.float32),
        "w_hh_t":     jnp.asarray(p["w_hh"].T, jnp.float32),
    }


# --------------------------- full forward --------------------------
@jax.jit
def encoder_forward(tokens, h0, c0, packed):
    # tokens: (B, T) int32 ; h0/c0: (1, B, H)  (nlayers*num_directions = 1)
    # Embedding gather, projection, dropout (identity) and time-major layout
    # are all fused into the single pallas_call below.
    B, T = tokens.shape
    out_slab, h_n, c_n = fused_encoder_core(
        tokens, packed["gate_table"], packed["w_hh_t"], h0[0], c0[0])
    out = out_slab.reshape(B, T, NHID)                    # (B, T, H) batch-first
    # dropout (p=0) -> identity
    return out, (h_n[None, :, :], c_n[None, :, :])


# ----------------------- pure-JAX reference ------------------------
def encoder_reference(tokens, h0, c0, params):
    emb = jnp.take(params["emb"], tokens, axis=0)
    B, T, E = emb.shape
    proj = (emb.reshape(B * T, E) @ params["w_proj"].T + params["b_proj"]).reshape(B, T, E)
    w_ih_t, w_hh_t = params["w_ih"].T, params["w_hh"].T
    bias = params["b_ih"] + params["b_hh"]

    def step(carry, x_t):
        h, c = carry
        gates = x_t @ w_ih_t + h @ w_hh_t + bias
        H = NHID
        i = jax.nn.sigmoid(gates[:, 0 * H:1 * H])
        f = jax.nn.sigmoid(gates[:, 1 * H:2 * H])
        g = jnp.tanh(gates[:, 2 * H:3 * H])
        o = jax.nn.sigmoid(gates[:, 3 * H:4 * H])
        c = f * c + i * g
        h = o * jnp.tanh(c)
        return (h, c), h

    (h_n, c_n), out_tm = jax.lax.scan(step, (h0[0], c0[0]),
                                      jnp.transpose(proj, (1, 0, 2)))
    return jnp.transpose(out_tm, (1, 0, 2)), (h_n[None], c_n[None])


# ------------------------------ main -------------------------------
if __name__ == "__main__":
    key = jax.random.PRNGKey(0)
    pkey, tkey = jax.random.split(key)
    params = init_params(pkey)
    packed = pack_params(params)

    tokens = jax.random.randint(tkey, (BATCH, SEQ), 0, VOCAB, dtype=jnp.int32)
    # init_weights(bsz): zero hidden state, shape (nlayers*num_dir, B, H)
    h0 = jnp.zeros((NLAYERS * 1, BATCH, NHID), jnp.float32)
    c0 = jnp.zeros((NLAYERS * 1, BATCH, NHID), jnp.float32)

    out, (h_n, c_n) = encoder_forward(tokens, h0, c0, packed)
    jax.block_until_ready((out, h_n, c_n))

    ref_out, (ref_h, ref_c) = encoder_reference(tokens, h0, c0, params)
    assert out.shape == (BATCH, SEQ, NHID)
    assert h_n.shape == (1, BATCH, NHID) and c_n.shape == (1, BATCH, NHID)
    assert jnp.allclose(out, ref_out, atol=1e-5), "output mismatch"
    assert jnp.allclose(h_n, ref_h, atol=1e-5), "h_n mismatch"
    assert jnp.allclose(c_n, ref_c, atol=1e-5), "c_n mismatch"

    print("KERNEL_OK")
</pallas_src>

<mosaic_0001>
module attributes {stable_mosaic.version = 11 : i64} {
  func.func @_encoder_kernel(%arg0: memref<2x8xi32, #tpu.memory_space<smem>>, %arg1: memref<50x128xf32, #tpu.memory_space<vmem>>, %arg2: memref<32x128xf32, #tpu.memory_space<vmem>>, %arg3: memref<2x32xf32, #tpu.memory_space<vmem>>, %arg4: memref<2x32xf32, #tpu.memory_space<vmem>>, %arg5: memref<2x256xf32, #tpu.memory_space<vmem>>, %arg6: memref<2x32xf32, #tpu.memory_space<vmem>>, %arg7: memref<2x32xf32, #tpu.memory_space<vmem>>, %arg8: memref<16x128xf32, #tpu.memory_space<vmem>>) attributes {dimension_semantics = [], scalar_prefetch = 0 : i64, scratch_operands = 1 : i64, tpu.core_type = #tpu.core_type<tc>} {
    %c0 = arith.constant 0 : index
    %c0_0 = arith.constant 0 : index
    %0 = memref.load %arg0[%c0, %c0_0] : memref<2x8xi32, #tpu.memory_space<smem>>
    %1 = arith.index_cast %0 : i32 to index
    %c0_1 = arith.constant 0 : index
    %2 = vector.load %arg1[%1, %c0_1] : memref<50x128xf32, #tpu.memory_space<vmem>>, vector<1x128xf32>
    %c0_2 = arith.constant 0 : index
    %c0_3 = arith.constant 0 : index
    %3 = vector.load %arg8[%c0_2, %c0_3] : memref<16x128xf32, #tpu.memory_space<vmem>>, vector<1x128xf32>
    tpu.vector_store %arg8[%c0_2, %c0_3], %2 {strides = array<i32>} : memref<16x128xf32, #tpu.memory_space<vmem>>, vector<1x128xf32>,
    %c1 = arith.constant 1 : index
    %c0_4 = arith.constant 0 : index
    %4 = memref.load %arg0[%c1, %c0_4] : memref<2x8xi32, #tpu.memory_space<smem>>
    %5 = arith.index_cast %4 : i32 to index
    %c0_5 = arith.constant 0 : index
    %6 = vector.load %arg1[%5, %c0_5] : memref<50x128xf32, #tpu.memory_space<vmem>>, vector<1x128xf32>
    %c1_6 = arith.constant 1 : index
    %c0_7 = arith.constant 0 : index
    %7 = vector.load %arg8[%c1_6, %c0_7] : memref<16x128xf32, #tpu.memory_space<vmem>>, vector<1x128xf32>
    tpu.vector_store %arg8[%c1_6, %c0_7], %6 {strides = array<i32>} : memref<16x128xf32, #tpu.memory_space<vmem>>, vector<1x128xf32>,
    %c0_8 = arith.constant 0 : index
    %c1_9 = arith.constant 1 : index
    %8 = memref.load %arg0[%c0_8, %c1_9] : memref<2x8xi32, #tpu.memory_space<smem>>
    %9 = arith.index_cast %8 : i32 to index
    %c0_10 = arith.constant 0 : index
    %10 = vector.load %arg1[%9, %c0_10] : memref<50x128xf32, #tpu.memory_space<vmem>>, vector<1x128xf32>
    %c2 = arith.constant 2 : index
    %c0_11 = arith.constant 0 : index
    %11 = vector.load %arg8[%c2, %c0_11] : memref<16x128xf32, #tpu.memory_space<vmem>>, vector<1x128xf32>
    tpu.vector_store %arg8[%c2, %c0_11], %10 {strides = array<i32>} : memref<16x128xf32, #tpu.memory_space<vmem>>, vector<1x128xf32>,
    %c1_12 = arith.constant 1 : index
    %c1_13 = arith.constant 1 : index
    %12 = memref.load %arg0[%c1_12, %c1_13] : memref<2x8xi32, #tpu.memory_space<smem>>
    %13 = arith.index_cast %12 : i32 to index
    %c0_14 = arith.constant 0 : index
    %14 = vector.load %arg1[%13, %c0_14] : memref<50x128xf32, #tpu.memory_space<vmem>>, vector<1x128xf32>
    %c3 = arith.constant 3 : index
    %c0_15 = arith.constant 0 : index
    %15 = vector.load %arg8[%c3, %c0_15] : memref<16x128xf32, #tpu.memory_space<vmem>>, vector<1x128xf32>
    tpu.vector_store %arg8[%c3, %c0_15], %14 {strides = array<i32>} : memref<16x128xf32, #tpu.memory_space<vmem>>, vector<1x128xf32>,
    %c0_16 = arith.constant 0 : index
    %c2_17 = arith.constant 2 : index
    %16 = memref.load %arg0[%c0_16, %c2_17] : memref<2x8xi32, #tpu.memory_space<smem>>
    %17 = arith.index_cast %16 : i32 to index
    %c0_18 = arith.constant 0 : index
    %18 = vector.load %arg1[%17, %c0_18] : memref<50x128xf32, #tpu.memory_space<vmem>>, vector<1x128xf32>
    %c4 = arith.constant 4 : index
    %c0_19 = arith.constant 0 : index
    %19 = vector.load %arg8[%c4, %c0_19] : memref<16x128xf32, #tpu.memory_space<vmem>>, vector<1x128xf32>
    tpu.vector_store %arg8[%c4, %c0_19], %18 {strides = array<i32>} : memref<16x128xf32, #tpu.memory_space<vmem>>, vector<1x128xf32>,
    %c1_20 = arith.constant 1 : index
    %c2_21 = arith.constant 2 : index
    %20 = memref.load %arg0[%c1_20, %c2_21] : memref<2x8xi32, #tpu.memory_space<smem>>
    %21 = arith.index_cast %20 : i32 to index
    %c0_22 = arith.constant 0 : index
    %22 = vector.load %arg1[%21, %c0_22] : memref<50x128xf32, #tpu.memory_space<vmem>>, vector<1x128xf32>
    %c5 = arith.constant 5 : index
    %c0_23 = arith.constant 0 : index
    %23 = vector.load %arg8[%c5, %c0_23] : memref<16x128xf32, #tpu.memory_space<vmem>>, vector<1x128xf32>
    tpu.vector_store %arg8[%c5, %c0_23], %22 {strides = array<i32>} : memref<16x128xf32, #tpu.memory_space<vmem>>, vector<1x128xf32>,
    %c0_24 = arith.constant 0 : index
    %c3_25 = arith.constant 3 : index
    %24 = memref.load %arg0[%c0_24, %c3_25] : memref<2x8xi32, #tpu.memory_space<smem>>
    %25 = arith.index_cast %24 : i32 to index
    %c0_26 = arith.constant 0 : index
    %26 = vector.load %arg1[%25, %c0_26] : memref<50x128xf32, #tpu.memory_space<vmem>>, vector<1x128xf32>
    %c6 = arith.constant 6 : index
    %c0_27 = arith.constant 0 : index
    %27 = vector.load %arg8[%c6, %c0_27] : memref<16x128xf32, #tpu.memory_space<vmem>>, vector<1x128xf32>
    tpu.vector_store %arg8[%c6, %c0_27], %26 {strides = array<i32>} : memref<16x128xf32, #tpu.memory_space<vmem>>, vector<1x128xf32>,
    %c1_28 = arith.constant 1 : index
    %c3_29 = arith.constant 3 : index
    %28 = memref.load %arg0[%c1_28, %c3_29] : memref<2x8xi32, #tpu.memory_space<smem>>
    %29 = arith.index_cast %28 : i32 to index
    %c0_30 = arith.constant 0 : index
    %30 = vector.load %arg1[%29, %c0_30] : memref<50x128xf32, #tpu.memory_space<vmem>>, vector<1x128xf32>
    %c7 = arith.constant 7 : index
    %c0_31 = arith.constant 0 : index
    %31 = vector.load %arg8[%c7, %c0_31] : memref<16x128xf32, #tpu.memory_space<vmem>>, vector<1x128xf32>
    tpu.vector_store %arg8[%c7, %c0_31], %30 {strides = array<i32>} : memref<16x128xf32, #tpu.memory_space<vmem>>, vector<1x128xf32>,
    %c0_32 = arith.constant 0 : index
    %c4_33 = arith.constant 4 : index
    %32 = memref.load %arg0[%c0_32, %c4_33] : memref<2x8xi32, #tpu.memory_space<smem>>
    %33 = arith.index_cast %32 : i32 to index
    %c0_34 = arith.constant 0 : index
    %34 = vector.load %arg1[%33, %c0_34] : memref<50x128xf32, #tpu.memory_space<vmem>>, vector<1x128xf32>
    %c8 = arith.constant 8 : index
    %c0_35 = arith.constant 0 : index
    %35 = vector.load %arg8[%c8, %c0_35] : memref<16x128xf32, #tpu.memory_space<vmem>>, vector<1x128xf32>
    tpu.vector_store %arg8[%c8, %c0_35], %34 {strides = array<i32>} : memref<16x128xf32, #tpu.memory_space<vmem>>, vector<1x128xf32>,
    %c1_36 = arith.constant 1 : index
    %c4_37 = arith.constant 4 : index
    %36 = memref.load %arg0[%c1_36, %c4_37] : memref<2x8xi32, #tpu.memory_space<smem>>
    %37 = arith.index_cast %36 : i32 to index
    %c0_38 = arith.constant 0 : index
    %38 = vector.load %arg1[%37, %c0_38] : memref<50x128xf32, #tpu.memory_space<vmem>>, vector<1x128xf32>
    %c9 = arith.constant 9 : index
    %c0_39 = arith.constant 0 : index
    %39 = vector.load %arg8[%c9, %c0_39] : memref<16x128xf32, #tpu.memory_space<vmem>>, vector<1x128xf32>
    tpu.vector_store %arg8[%c9, %c0_39], %38 {strides = array<i32>} : memref<16x128xf32, #tpu.memory_space<vmem>>, vector<1x128xf32>,
    %c0_40 = arith.constant 0 : index
    %c5_41 = arith.constant 5 : index
    %40 = memref.load %arg0[%c0_40, %c5_41] : memref<2x8xi32, #tpu.memory_space<smem>>
    %41 = arith.index_cast %40 : i32 to index
    %c0_42 = arith.constant 0 : index
    %42 = vector.load %arg1[%41, %c0_42] : memref<50x128xf32, #tpu.memory_space<vmem>>, vector<1x128xf32>
    %c10 = arith.constant 10 : index
    %c0_43 = arith.constant 0 : index
    %43 = vector.load %arg8[%c10, %c0_43] : memref<16x128xf32, #tpu.memory_space<vmem>>, vector<1x128xf32>
    tpu.vector_store %arg8[%c10, %c0_43], %42 {strides = array<i32>} : memref<16x128xf32, #tpu.memory_space<vmem>>, vector<1x128xf32>,
    %c1_44 = arith.constant 1 : index
    %c5_45 = arith.constant 5 : index
    %44 = memref.load %arg0[%c1_44, %c5_45] : memref<2x8xi32, #tpu.memory_space<smem>>
    %45 = arith.index_cast %44 : i32 to index
    %c0_46 = arith.constant 0 : index
    %46 = vector.load %arg1[%45, %c0_46] : memref<50x128xf32, #tpu.memory_space<vmem>>, vector<1x128xf32>
    %c11 = arith.constant 11 : index
    %c0_47 = arith.constant 0 : index
    %47 = vector.load %arg8[%c11, %c0_47] : memref<16x128xf32, #tpu.memory_space<vmem>>, vector<1x128xf32>
    tpu.vector_store %arg8[%c11, %c0_47], %46 {strides = array<i32>} : memref<16x128xf32, #tpu.memory_space<vmem>>, vector<1x128xf32>,
    %c0_48 = arith.constant 0 : index
    %c6_49 = arith.constant 6 : index
    %48 = memref.load %arg0[%c0_48, %c6_49] : memref<2x8xi32, #tpu.memory_space<smem>>
    %49 = arith.index_cast %48 : i32 to index
    %c0_50 = arith.constant 0 : index
    %50 = vector.load %arg1[%49, %c0_50] : memref<50x128xf32, #tpu.memory_space<vmem>>, vector<1x128xf32>
    %c12 = arith.constant 12 : index
    %c0_51 = arith.constant 0 : index
    %51 = vector.load %arg8[%c12, %c0_51] : memref<16x128xf32, #tpu.memory_space<vmem>>, vector<1x128xf32>
    tpu.vector_store %arg8[%c12, %c0_51], %50 {strides = array<i32>} : memref<16x128xf32, #tpu.memory_space<vmem>>, vector<1x128xf32>,
    %c1_52 = arith.constant 1 : index
    %c6_53 = arith.constant 6 : index
    %52 = memref.load %arg0[%c1_52, %c6_53] : memref<2x8xi32, #tpu.memory_space<smem>>
    %53 = arith.index_cast %52 : i32 to index
    %c0_54 = arith.constant 0 : index
    %54 = vector.load %arg1[%53, %c0_54] : memref<50x128xf32, #tpu.memory_space<vmem>>, vector<1x128xf32>
    %c13 = arith.constant 13 : index
    %c0_55 = arith.constant 0 : index
    %55 = vector.load %arg8[%c13, %c0_55] : memref<16x128xf32, #tpu.memory_space<vmem>>, vector<1x128xf32>
    tpu.vector_store %arg8[%c13, %c0_55], %54 {strides = array<i32>} : memref<16x128xf32, #tpu.memory_space<vmem>>, vector<1x128xf32>,
    %c0_56 = arith.constant 0 : index
    %c7_57 = arith.constant 7 : index
    %56 = memref.load %arg0[%c0_56, %c7_57] : memref<2x8xi32, #tpu.memory_space<smem>>
    %57 = arith.index_cast %56 : i32 to index
    %c0_58 = arith.constant 0 : index
    %58 = vector.load %arg1[%57, %c0_58] : memref<50x128xf32, #tpu.memory_space<vmem>>, vector<1x128xf32>
    %c14 = arith.constant 14 : index
    %c0_59 = arith.constant 0 : index
    %59 = vector.load %arg8[%c14, %c0_59] : memref<16x128xf32, #tpu.memory_space<vmem>>, vector<1x128xf32>
    tpu.vector_store %arg8[%c14, %c0_59], %58 {strides = array<i32>} : memref<16x128xf32, #tpu.memory_space<vmem>>, vector<1x128xf32>,
    %c1_60 = arith.constant 1 : index
    %c7_61 = arith.constant 7 : index
    %60 = memref.load %arg0[%c1_60, %c7_61] : memref<2x8xi32, #tpu.memory_space<smem>>
    %61 = arith.index_cast %60 : i32 to index
    %c0_62 = arith.constant 0 : index
    %62 = vector.load %arg1[%61, %c0_62] : memref<50x128xf32, #tpu.memory_space<vmem>>, vector<1x128xf32>
    %c15 = arith.constant 15 : index
    %c0_63 = arith.constant 0 : index
    %63 = vector.load %arg8[%c15, %c0_63] : memref<16x128xf32, #tpu.memory_space<vmem>>, vector<1x128xf32>
    tpu.vector_store %arg8[%c15, %c0_63], %62 {strides = array<i32>} : memref<16x128xf32, #tpu.memory_space<vmem>>, vector<1x128xf32>,
    %c0_64 = arith.constant 0 : index
    %c0_65 = arith.constant 0 : index
    %64 = vector.load %arg8[%c0_64, %c0_65] : memref<16x128xf32, #tpu.memory_space<vmem>>, vector<16x128xf32>
    %c0_66 = arith.constant 0 : index
    %c0_67 = arith.constant 0 : index
    %65 = vector.load %arg2[%c0_66, %c0_67] : memref<32x128xf32, #tpu.memory_space<vmem>>, vector<32x128xf32>
    %c0_68 = arith.constant 0 : index
    %c0_69 = arith.constant 0 : index
    %66 = vector.load %arg3[%c0_68, %c0_69] : memref<2x32xf32, #tpu.memory_space<vmem>>, vector<2x32xf32>
    %c0_70 = arith.constant 0 : index
    %c0_71 = arith.constant 0 : index
    %67 = vector.load %arg4[%c0_70, %c0_71] : memref<2x32xf32, #tpu.memory_space<vmem>>, vector<2x32xf32>
    %68 = vector.extract_strided_slice %64 {offsets = [0, 0], sizes = [2, 128], strides = [1, 1]} : vector<16x128xf32> to vector<2x128xf32>
    %cst = arith.constant dense<0.000000e+00> : vector<2x128xf32>
    %69 = tpu.matmul %66, %65, %cst {dimension_numbers = #tpu.dot_dimension_numbers<[1], [0], [0], [1], [0, 0, 1, 1], [], []>} : vector<2x32xf32>, vector<32x128xf32>, vector<2x128xf32> -> vector<2x128xf32>
    %70 = arith.addf %68, %69 : vector<2x128xf32>
    %71 = arith.negf %70 : vector<2x128xf32>
    %72 = math.exp %71 : vector<2x128xf32>
    %cst_72 = arith.constant 1.000000e+00 : f32
    %73 = vector.broadcast %cst_72 : f32 to vector<2x128xf32>
    %74 = arith.addf %73, %72 : vector<2x128xf32>
    %75 = arith.divf %73, %74 : vector<2x128xf32>
    %76 = math.tanh %70 : vector<2x128xf32>
    %77 = vector.extract_strided_slice %75 {offsets = [0, 0], sizes = [2, 32], strides = [1, 1]} : vector<2x128xf32> to vector<2x32xf32>
    %78 = vector.extract_strided_slice %75 {offsets = [0, 32], sizes = [2, 32], strides = [1, 1]} : vector<2x128xf32> to vector<2x32xf32>
    %79 = vector.extract_strided_slice %76 {offsets = [0, 64], sizes = [2, 32], strides = [1, 1]} : vector<2x128xf32> to vector<2x32xf32>
    %80 = vector.extract_strided_slice %75 {offsets = [0, 96], sizes = [2, 32], strides = [1, 1]} : vector<2x128xf32> to vector<2x32xf32>
    %81 = arith.mulf %78, %67 : vector<2x32xf32>
    %82 = arith.mulf %77, %79 : vector<2x32xf32>
    %83 = arith.addf %81, %82 : vector<2x32xf32>
    %84 = math.tanh %83 : vector<2x32xf32>
    %85 = arith.mulf %80, %84 : vector<2x32xf32>
    %c0_73 = arith.constant 0 : index
    %c0_74 = arith.constant 0 : index
    %86 = vector.load %arg5[%c0_73, %c0_74] : memref<2x256xf32, #tpu.memory_space<vmem>>, vector<2x32xf32>
    tpu.vector_store %arg5[%c0_73, %c0_74], %85 {strides = array<i32>} : memref<2x256xf32, #tpu.memory_space<vmem>>, vector<2x32xf32>,
    %87 = vector.extract_strided_slice %64 {offsets = [2, 0], sizes = [2, 128], strides = [1, 1]} : vector<16x128xf32> to vector<2x128xf32>
    %cst_75 = arith.constant dense<0.000000e+00> : vector<2x128xf32>
    %88 = tpu.matmul %85, %65, %cst_75 {dimension_numbers = #tpu.dot_dimension_numbers<[1], [0], [0], [1], [0, 0, 1, 1], [], []>} : vector<2x32xf32>, vector<32x128xf32>, vector<2x128xf32> -> vector<2x128xf32>
    %89 = arith.addf %87, %88 : vector<2x128xf32>
    %90 = arith.negf %89 : vector<2x128xf32>
    %91 = math.exp %90 : vector<2x128xf32>
    %cst_76 = arith.constant 1.000000e+00 : f32
    %92 = vector.broadcast %cst_76 : f32 to vector<2x128xf32>
    %93 = arith.addf %92, %91 : vector<2x128xf32>
    %94 = arith.divf %92, %93 : vector<2x128xf32>
    %95 = math.tanh %89 : vector<2x128xf32>
    %96 = vector.extract_strided_slice %94 {offsets = [0, 0], sizes = [2, 32], strides = [1, 1]} : vector<2x128xf32> to vector<2x32xf32>
    %97 = vector.extract_strided_slice %94 {offsets = [0, 32], sizes = [2, 32], strides = [1, 1]} : vector<2x128xf32> to vector<2x32xf32>
    %98 = vector.extract_strided_slice %95 {offsets = [0, 64], sizes = [2, 32], strides = [1, 1]} : vector<2x128xf32> to vector<2x32xf32>
    %99 = vector.extract_strided_slice %94 {offsets = [0, 96], sizes = [2, 32], strides = [1, 1]} : vector<2x128xf32> to vector<2x32xf32>
    %100 = arith.mulf %97, %83 : vector<2x32xf32>
    %101 = arith.mulf %96, %98 : vector<2x32xf32>
    %102 = arith.addf %100, %101 : vector<2x32xf32>
    %103 = math.tanh %102 : vector<2x32xf32>
    %104 = arith.mulf %99, %103 : vector<2x32xf32>
    %c0_77 = arith.constant 0 : index
    %c32 = arith.constant 32 : index
    %105 = vector.load %arg5[%c0_77, %c32] : memref<2x256xf32, #tpu.memory_space<vmem>>, vector<2x32xf32>
    tpu.vector_store %arg5[%c0_77, %c32], %104 {strides = array<i32>} : memref<2x256xf32, #tpu.memory_space<vmem>>, vector<2x32xf32>,
    %106 = vector.extract_strided_slice %64 {offsets = [4, 0], sizes = [2, 128], strides = [1, 1]} : vector<16x128xf32> to vector<2x128xf32>
    %cst_78 = arith.constant dense<0.000000e+00> : vector<2x128xf32>
    %107 = tpu.matmul %104, %65, %cst_78 {dimension_numbers = #tpu.dot_dimension_numbers<[1], [0], [0], [1], [0, 0, 1, 1], [], []>} : vector<2x32xf32>, vector<32x128xf32>, vector<2x128xf32> -> vector<2x128xf32>
    %108 = arith.addf %106, %107 : vector<2x128xf32>
    %109 = arith.negf %108 : vector<2x128xf32>
    %110 = math.exp %109 : vector<2x128xf32>
    %cst_79 = arith.constant 1.000000e+00 : f32
    %111 = vector.broadcast %cst_79 : f32 to vector<2x128xf32>
    %112 = arith.addf %111, %110 : vector<2x128xf32>
    %113 = arith.divf %111, %112 : vector<2x128xf32>
    %114 = math.tanh %108 : vector<2x128xf32>
    %115 = vector.extract_strided_slice %113 {offsets = [0, 0], sizes = [2, 32], strides = [1, 1]} : vector<2x128xf32> to vector<2x32xf32>
    %116 = vector.extract_strided_slice %113 {offsets = [0, 32], sizes = [2, 32], strides = [1, 1]} : vector<2x128xf32> to vector<2x32xf32>
    %117 = vector.extract_strided_slice %114 {offsets = [0, 64], sizes = [2, 32], strides = [1, 1]} : vector<2x128xf32> to vector<2x32xf32>
    %118 = vector.extract_strided_slice %113 {offsets = [0, 96], sizes = [2, 32], strides = [1, 1]} : vector<2x128xf32> to vector<2x32xf32>
    %119 = arith.mulf %116, %102 : vector<2x32xf32>
    %120 = arith.mulf %115, %117 : vector<2x32xf32>
    %121 = arith.addf %119, %120 : vector<2x32xf32>
    %122 = math.tanh %121 : vector<2x32xf32>
    %123 = arith.mulf %118, %122 : vector<2x32xf32>
    %c0_80 = arith.constant 0 : index
    %c64 = arith.constant 64 : index
    %124 = vector.load %arg5[%c0_80, %c64] : memref<2x256xf32, #tpu.memory_space<vmem>>, vector<2x32xf32>
    tpu.vector_store %arg5[%c0_80, %c64], %123 {strides = array<i32>} : memref<2x256xf32, #tpu.memory_space<vmem>>, vector<2x32xf32>,
    %125 = vector.extract_strided_slice %64 {offsets = [6, 0], sizes = [2, 128], strides = [1, 1]} : vector<16x128xf32> to vector<2x128xf32>
    %cst_81 = arith.constant dense<0.000000e+00> : vector<2x128xf32>
    %126 = tpu.matmul %123, %65, %cst_81 {dimension_numbers = #tpu.dot_dimension_numbers<[1], [0], [0], [1], [0, 0, 1, 1], [], []>} : vector<2x32xf32>, vector<32x128xf32>, vector<2x128xf32> -> vector<2x128xf32>
    %127 = arith.addf %125, %126 : vector<2x128xf32>
    %128 = arith.negf %127 : vector<2x128xf32>
    %129 = math.exp %128 : vector<2x128xf32>
    %cst_82 = arith.constant 1.000000e+00 : f32
    %130 = vector.broadcast %cst_82 : f32 to vector<2x128xf32>
    %131 = arith.addf %130, %129 : vector<2x128xf32>
    %132 = arith.divf %130, %131 : vector<2x128xf32>
    %133 = math.tanh %127 : vector<2x128xf32>
    %134 = vector.extract_strided_slice %132 {offsets = [0, 0], sizes = [2, 32], strides = [1, 1]} : vector<2x128xf32> to vector<2x32xf32>
    %135 = vector.extract_strided_slice %132 {offsets = [0, 32], sizes = [2, 32], strides = [1, 1]} : vector<2x128xf32> to vector<2x32xf32>
    %136 = vector.extract_strided_slice %133 {offsets = [0, 64], sizes = [2, 32], strides = [1, 1]} : vector<2x128xf32> to vector<2x32xf32>
    %137 = vector.extract_strided_slice %132 {offsets = [0, 96], sizes = [2, 32], strides = [1, 1]} : vector<2x128xf32> to vector<2x32xf32>
    %138 = arith.mulf %135, %121 : vector<2x32xf32>
    %139 = arith.mulf %134, %136 : vector<2x32xf32>
    %140 = arith.addf %138, %139 : vector<2x32xf32>
    %141 = math.tanh %140 : vector<2x32xf32>
    %142 = arith.mulf %137, %141 : vector<2x32xf32>
    %c0_83 = arith.constant 0 : index
    %c96 = arith.constant 96 : index
    %143 = vector.load %arg5[%c0_83, %c96] : memref<2x256xf32, #tpu.memory_space<vmem>>, vector<2x32xf32>
    tpu.vector_store %arg5[%c0_83, %c96], %142 {strides = array<i32>} : memref<2x256xf32, #tpu.memory_space<vmem>>, vector<2x32xf32>,
    %144 = vector.extract_strided_slice %64 {offsets = [8, 0], sizes = [2, 128], strides = [1, 1]} : vector<16x128xf32> to vector<2x128xf32>
    %cst_84 = arith.constant dense<0.000000e+00> : vector<2x128xf32>
    %145 = tpu.matmul %142, %65, %cst_84 {dimension_numbers = #tpu.dot_dimension_numbers<[1], [0], [0], [1], [0, 0, 1, 1], [], []>} : vector<2x32xf32>, vector<32x128xf32>, vector<2x128xf32> -> vector<2x128xf32>
    %146 = arith.addf %144, %145 : vector<2x128xf32>
    %147 = arith.negf %146 : vector<2x128xf32>
    %148 = math.exp %147 : vector<2x128xf32>
    %cst_85 = arith.constant 1.000000e+00 : f32
    %149 = vector.broadcast %cst_85 : f32 to vector<2x128xf32>
    %150 = arith.addf %149, %148 : vector<2x128xf32>
    %151 = arith.divf %149, %150 : vector<2x128xf32>
    %152 = math.tanh %146 : vector<2x128xf32>
    %153 = vector.extract_strided_slice %151 {offsets = [0, 0], sizes = [2, 32], strides = [1, 1]} : vector<2x128xf32> to vector<2x32xf32>
    %154 = vector.extract_strided_slice %151 {offsets = [0, 32], sizes = [2, 32], strides = [1, 1]} : vector<2x128xf32> to vector<2x32xf32>
    %155 = vector.extract_strided_slice %152 {offsets = [0, 64], sizes = [2, 32], strides = [1, 1]} : vector<2x128xf32> to vector<2x32xf32>
    %156 = vector.extract_strided_slice %151 {offsets = [0, 96], sizes = [2, 32], strides = [1, 1]} : vector<2x128xf32> to vector<2x32xf32>
    %157 = arith.mulf %154, %140 : vector<2x32xf32>
    %158 = arith.mulf %153, %155 : vector<2x32xf32>
    %159 = arith.addf %157, %158 : vector<2x32xf32>
    %160 = math.tanh %159 : vector<2x32xf32>
    %161 = arith.mulf %156, %160 : vector<2x32xf32>
    %c0_86 = arith.constant 0 : index
    %c128 = arith.constant 128 : index
    %162 = vector.load %arg5[%c0_86, %c128] : memref<2x256xf32, #tpu.memory_space<vmem>>, vector<2x32xf32>
    tpu.vector_store %arg5[%c0_86, %c128], %161 {strides = array<i32>} : memref<2x256xf32, #tpu.memory_space<vmem>>, vector<2x32xf32>,
    %163 = vector.extract_strided_slice %64 {offsets = [10, 0], sizes = [2, 128], strides = [1, 1]} : vector<16x128xf32> to vector<2x128xf32>
    %cst_87 = arith.constant dense<0.000000e+00> : vector<2x128xf32>
    %164 = tpu.matmul %161, %65, %cst_87 {dimension_numbers = #tpu.dot_dimension_numbers<[1], [0], [0], [1], [0, 0, 1, 1], [], []>} : vector<2x32xf32>, vector<32x128xf32>, vector<2x128xf32> -> vector<2x128xf32>
    %165 = arith.addf %163, %164 : vector<2x128xf32>
    %166 = arith.negf %165 : vector<2x128xf32>
    %167 = math.exp %166 : vector<2x128xf32>
    %cst_88 = arith.constant 1.000000e+00 : f32
    %168 = vector.broadcast %cst_88 : f32 to vector<2x128xf32>
    %169 = arith.addf %168, %167 : vector<2x128xf32>
    %170 = arith.divf %168, %169 : vector<2x128xf32>
    %171 = math.tanh %165 : vector<2x128xf32>
    %172 = vector.extract_strided_slice %170 {offsets = [0, 0], sizes = [2, 32], strides = [1, 1]} : vector<2x128xf32> to vector<2x32xf32>
    %173 = vector.extract_strided_slice %170 {offsets = [0, 32], sizes = [2, 32], strides = [1, 1]} : vector<2x128xf32> to vector<2x32xf32>
    %174 = vector.extract_strided_slice %171 {offsets = [0, 64], sizes = [2, 32], strides = [1, 1]} : vector<2x128xf32> to vector<2x32xf32>
    %175 = vector.extract_strided_slice %170 {offsets = [0, 96], sizes = [2, 32], strides = [1, 1]} : vector<2x128xf32> to vector<2x32xf32>
    %176 = arith.mulf %173, %159 : vector<2x32xf32>
    %177 = arith.mulf %172, %174 : vector<2x32xf32>
    %178 = arith.addf %176, %177 : vector<2x32xf32>
    %179 = math.tanh %178 : vector<2x32xf32>
    %180 = arith.mulf %175, %179 : vector<2x32xf32>
    %c0_89 = arith.constant 0 : index
    %c160 = arith.constant 160 : index
    %181 = vector.load %arg5[%c0_89, %c160] : memref<2x256xf32, #tpu.memory_space<vmem>>, vector<2x32xf32>
    tpu.vector_store %arg5[%c0_89, %c160], %180 {strides = array<i32>} : memref<2x256xf32, #tpu.memory_space<vmem>>, vector<2x32xf32>,
    %182 = vector.extract_strided_slice %64 {offsets = [12, 0], sizes = [2, 128], strides = [1, 1]} : vector<16x128xf32> to vector<2x128xf32>
    %cst_90 = arith.constant dense<0.000000e+00> : vector<2x128xf32>
    %183 = tpu.matmul %180, %65, %cst_90 {dimension_numbers = #tpu.dot_dimension_numbers<[1], [0], [0], [1], [0, 0, 1, 1], [], []>} : vector<2x32xf32>, vector<32x128xf32>, vector<2x128xf32> -> vector<2x128xf32>
    %184 = arith.addf %182, %183 : vector<2x128xf32>
    %185 = arith.negf %184 : vector<2x128xf32>
    %186 = math.exp %185 : vector<2x128xf32>
    %cst_91 = arith.constant 1.000000e+00 : f32
    %187 = vector.broadcast %cst_91 : f32 to vector<2x128xf32>
    %188 = arith.addf %187, %186 : vector<2x128xf32>
    %189 = arith.divf %187, %188 : vector<2x128xf32>
    %190 = math.tanh %184 : vector<2x128xf32>
    %191 = vector.extract_strided_slice %189 {offsets = [0, 0], sizes = [2, 32], strides = [1, 1]} : vector<2x128xf32> to vector<2x32xf32>
    %192 = vector.extract_strided_slice %189 {offsets = [0, 32], sizes = [2, 32], strides = [1, 1]} : vector<2x128xf32> to vector<2x32xf32>
    %193 = vector.extract_strided_slice %190 {offsets = [0, 64], sizes = [2, 32], strides = [1, 1]} : vector<2x128xf32> to vector<2x32xf32>
    %194 = vector.extract_strided_slice %189 {offsets = [0, 96], sizes = [2, 32], strides = [1, 1]} : vector<2x128xf32> to vector<2x32xf32>
    %195 = arith.mulf %192, %178 : vector<2x32xf32>
    %196 = arith.mulf %191, %193 : vector<2x32xf32>
    %197 = arith.addf %195, %196 : vector<2x32xf32>
    %198 = math.tanh %197 : vector<2x32xf32>
    %199 = arith.mulf %194, %198 : vector<2x32xf32>
    %c0_92 = arith.constant 0 : index
    %c192 = arith.constant 192 : index
    %200 = vector.load %arg5[%c0_92, %c192] : memref<2x256xf32, #tpu.memory_space<vmem>>, vector<2x32xf32>
    tpu.vector_store %arg5[%c0_92, %c192], %199 {strides = array<i32>} : memref<2x256xf32, #tpu.memory_space<vmem>>, vector<2x32xf32>,
    %201 = vector.extract_strided_slice %64 {offsets = [14, 0], sizes = [2, 128], strides = [1, 1]} : vector<16x128xf32> to vector<2x128xf32>
    %cst_93 = arith.constant dense<0.000000e+00> : vector<2x128xf32>
    %202 = tpu.matmul %199, %65, %cst_93 {dimension_numbers = #tpu.dot_dimension_numbers<[1], [0], [0], [1], [0, 0, 1, 1], [], []>} : vector<2x32xf32>, vector<32x128xf32>, vector<2x128xf32> -> vector<2x128xf32>
    %203 = arith.addf %201, %202 : vector<2x128xf32>
    %204 = arith.negf %203 : vector<2x128xf32>
    %205 = math.exp %204 : vector<2x128xf32>
    %cst_94 = arith.constant 1.000000e+00 : f32
    %206 = vector.broadcast %cst_94 : f32 to vector<2x128xf32>
    %207 = arith.addf %206, %205 : vector<2x128xf32>
    %208 = arith.divf %206, %207 : vector<2x128xf32>
    %209 = math.tanh %203 : vector<2x128xf32>
    %210 = vector.extract_strided_slice %208 {offsets = [0, 0], sizes = [2, 32], strides = [1, 1]} : vector<2x128xf32> to vector<2x32xf32>
    %211 = vector.extract_strided_slice %208 {offsets = [0, 32], sizes = [2, 32], strides = [1, 1]} : vector<2x128xf32> to vector<2x32xf32>
    %212 = vector.extract_strided_slice %209 {offsets = [0, 64], sizes = [2, 32], strides = [1, 1]} : vector<2x128xf32> to vector<2x32xf32>
    %213 = vector.extract_strided_slice %208 {offsets = [0, 96], sizes = [2, 32], strides = [1, 1]} : vector<2x128xf32> to vector<2x32xf32>
    %214 = arith.mulf %211, %197 : vector<2x32xf32>
    %215 = arith.mulf %210, %212 : vector<2x32xf32>
    %216 = arith.addf %214, %215 : vector<2x32xf32>
    %217 = math.tanh %216 : vector<2x32xf32>
    %218 = arith.mulf %213, %217 : vector<2x32xf32>
    %c0_95 = arith.constant 0 : index
    %c224 = arith.constant 224 : index
    %219 = vector.load %arg5[%c0_95, %c224] : memref<2x256xf32, #tpu.memory_space<vmem>>, vector<2x32xf32>
    tpu.vector_store %arg5[%c0_95, %c224], %218 {strides = array<i32>} : memref<2x256xf32, #tpu.memory_space<vmem>>, vector<2x32xf32>,
    %c0_96 = arith.constant 0 : index
    %c0_97 = arith.constant 0 : index
    %220 = vector.load %arg6[%c0_96, %c0_97] : memref<2x32xf32, #tpu.memory_space<vmem>>, vector<2x32xf32>
    tpu.vector_store %arg6[%c0_96, %c0_97], %218 {strides = array<i32>} : memref<2x32xf32, #tpu.memory_space<vmem>>, vector<2x32xf32>,
    %c0_98 = arith.constant 0 : index
    %c0_99 = arith.constant 0 : index
    %221 = vector.load %arg7[%c0_98, %c0_99] : memref<2x32xf32, #tpu.memory_space<vmem>>, vector<2x32xf32>
    tpu.vector_store %arg7[%c0_98, %c0_99], %216 {strides = array<i32>} : memref<2x32xf32, #tpu.memory_space<vmem>>, vector<2x32xf32>,
    return
  }
}

</mosaic_0001>

<llo_original>
// kernel: encoder_forward.1
$region0: #{encoder_forward.1}
  #allocation0 [shape = 'u32[]', space=smem, size = 0x4, offset = 0x4, fixed_abs, tag = 'smem constant byte address 0x4 - core index']
  #allocation1 [shape = 'u32[144,128]{1,0:T(1,128)}', space=vmem, size = 0x12000, scoped, tag = 'internal scratch']
  #allocation2 [shape = 'f32[16,128]{1,0:T(8,128)}', space=vmem, size = 0x2000, scoped, tag = 'scratch operand']
  %s0 = inlined_call_operand.vmem [shape: s32[2,8], index: 0, kind: input, shape index: {}]
  %s1 = inlined_call_operand.hbm [shape: f32[50,128], index: 1, kind: input, shape index: {}]
  %s2 = inlined_call_operand.hbm [shape: f32[32,128], index: 2, kind: input, shape index: {}]
  %s3 = inlined_call_operand.vmem [shape: f32[2,32], index: 3, kind: input, shape index: {}]
  %s4 = inlined_call_operand.vmem [shape: f32[2,32], index: 4, kind: input, shape index: {}]
  %s5 = inlined_call_operand.vmem [shape: f32[2,256], index: 5, kind: output, shape index: {0}]
  %s6 = inlined_call_operand.hbm [shape: f32[2,32], index: 6, kind: output, shape index: {1}]
  %s7 = inlined_call_operand.hbm [shape: f32[2,32], index: 7, kind: output, shape index: {2}]
  %8 = xla_tuple %s5, %s6, %s7
  %s9 = sld [smem:[#allocation0]]
  $region58: #{encoder_forward.1} parent=0
    _
  %s11 = ssub.s32 1, %s9
  %s12 = scalar_select 0, %s11, %s9
  $region1: #{encoder_forward.1} parent=0
    #allocation3 [shape = 'u8[1024]{0}', space=smem, size = 0x400, scoped, tag = 'input window, operand 0, single buffered']
    #allocation4 [shape = 's32[1]{0}', space=sflag, size = 0x4, scoped, tag = 'scoped memory for encoder_forward.1']
    #allocation5 [shape = 's32[1]{0}', space=sflag, size = 0x4, scoped, tag = 'scoped memory for encoder_forward.1']
    #allocation6 [shape = 's32[1]{0}', space=sflag, size = 0x4, scoped, tag = 'scoped memory for encoder_forward.1']
    #allocation7 [shape = 'u8[28672]{0}', space=vmem, size = 0x7000, scoped, tag = 'input window, operand 1, single buffered']
    #allocation8 [shape = 'u8[16384]{0}', space=vmem, size = 0x4000, scoped, tag = 'input window, operand 2, single buffered']
    #allocation9 [shape = 's32[1]{0}', space=sflag, size = 0x4, scoped, tag = 'scoped memory for encoder_forward.1']
    #allocation10 [shape = 'u8[1024]{0}', space=vmem, size = 0x400, scoped, tag = 'output window, operand 1, single buffered']
    #allocation11 [shape = 'u8[1024]{0}', space=vmem, size = 0x400, scoped, tag = 'output window, operand 2, single buffered']
    #allocation12 [shape = 's32[1]{0}', space=sflag, size = 0x4, scoped, tag = 'scoped memory for encoder_forward.1']
    %13 = vsyncpa [#allocation6], 0
    %14 = vsyncpa [#allocation4], 0
    %15 = vsyncpa [#allocation9], 0
    %16 = vsyncpa [#allocation5], 0
    %17 = vsyncpa [#allocation12], 0
    // Predicated region
    $region2: #{encoder_forward.1} parent=1 // pred_check
      _
    $region3: #{encoder_forward.1} parent=1 // pred_check_branch
      %19 = sbr.rel (0) target = $region5
    $region4: #{encoder_forward.1} parent=1 // pred_region
      %s21 = ssub.s32 32, 32
      %22 = vsyncadd [#allocation6], %s21
      %s24 = sshll.u32 %s0, 4
      %s25 = int_to_ptr.vmem [resolvable:$true] %s24
      %27 = dma.vmem_to_smem %s25, 32, [#allocation3], [#allocation6]
    $region5: #{encoder_forward.1} parent=1 // pred_fallthru
      _
    // Predicated region
    $region6: #{encoder_forward.1} parent=1 // pred_check
      _
    $region7: #{encoder_forward.1} parent=1 // pred_check_branch
      %29 = sbr.rel (0) target = $region9
    $region8: #{encoder_forward.1} parent=1 // pred_region
      %s31 = ssub.s32 896, 896
      %32 = vsyncadd [#allocation4], %s31
      %s33 = sshll.u32 [#allocation7], 4
      %s34 = int_to_ptr.vmem [resolvable:$true] %s33
      %39 = dma.hbm_to_vmem [thread:$0]  %s1, 896, %s34, [#allocation4], 128, 128, 8
    $region9: #{encoder_forward.1} parent=1 // pred_fallthru
      _
    // Predicated region
    $region10: #{encoder_forward.1} parent=1 // pred_check
      _
    $region11: #{encoder_forward.1} parent=1 // pred_check_branch
      %41 = sbr.rel (0) target = $region13
    $region12: #{encoder_forward.1} parent=1 // pred_region
      %s43 = ssub.s32 512, 512
      %44 = vsyncadd [#allocation9], %s43
      %s45 = sshll.u32 [#allocation8], 4
      %s46 = int_to_ptr.vmem [resolvable:$true] %s45
      %51 = dma.hbm_to_vmem [thread:$0]  %s2, 512, %s46, [#allocation9], 128, 128, 8
    $region13: #{encoder_forward.1} parent=1 // pred_fallthru
      _
    // Predicated region
    $region14: #{encoder_forward.1} parent=1 // pred_check
      _
    $region15: #{encoder_forward.1} parent=1 // pred_check_branch
      %53 = sbr.rel (0) target = $region17
    $region16: #{encoder_forward.1} parent=1 // pred_region
      _
    $region17: #{encoder_forward.1} parent=1 // pred_fallthru
      _
    // Predicated region
    $region18: #{encoder_forward.1} parent=1 // pred_check
      _
    $region19: #{encoder_forward.1} parent=1 // pred_check_branch
      %55 = sbr.rel (0) target = $region21
    $region20: #{encoder_forward.1} parent=1 // pred_region
      _
    $region21: #{encoder_forward.1} parent=1 // pred_fallthru
      _
    // Predicated region
    $region22: #{encoder_forward.1} parent=1 // pred_check
      _
    $region23: #{encoder_forward.1} parent=1 // pred_check_branch
      %57 = sbr.rel (0) target = $region25
    $region24: #{encoder_forward.1} parent=1 // pred_region
      %58 = dma.done [#allocation6], 32
    $region25: #{encoder_forward.1} parent=1 // pred_fallthru
      _
    // Predicated region
    $region26: #{encoder_forward.1} parent=1 // pred_check
      _
    $region27: #{encoder_forward.1} parent=1 // pred_check_branch
      %60 = sbr.rel (0) target = $region29
    $region28: #{encoder_forward.1} parent=1 // pred_region
      %61 = dma.done [#allocation4], 896
    $region29: #{encoder_forward.1} parent=1 // pred_fallthru
      _
    // Predicated region
    $region30: #{encoder_forward.1} parent=1 // pred_check
      _
    $region31: #{encoder_forward.1} parent=1 // pred_check_branch
      %63 = sbr.rel (0) target = $region33
    $region32: #{encoder_forward.1} parent=1 // pred_region
      %64 = dma.done [#allocation9], 512
    $region33: #{encoder_forward.1} parent=1 // pred_fallthru
      _
    %65 = sfence
    %s66 = sld [smem:[#allocation3]]
    %s67 = scalar_lea.vmem [#allocation7], %s66
    %v68 = vld [vmem:[%s67] sm:$0x1]
    %69 = vst [vmem:[#allocation2] sm:$0x1] %v68
    %s70 = sld [smem:[#allocation3 + $0x80]]
    %s71 = scalar_lea.vmem [#allocation7], %s70
    %v72 = vld [vmem:[%s71] sm:$0x1]
    %73 = vst [vmem:[#allocation2 + $0x1] sm:$0x1] %v72
    %s74 = sld [smem:[#allocation3 + $0x1]]
    %s75 = scalar_lea.vmem [#allocation7], %s74
    %v76 = vld [vmem:[%s75] sm:$0x1]
    %77 = vst [vmem:[#allocation2 + $0x2] sm:$0x1] %v76
    %s78 = sld [smem:[#allocation3 + $0x81]]
    %s79 = scalar_lea.vmem [#allocation7], %s78
    %v80 = vld [vmem:[%s79] sm:$0x1]
    %81 = vst [vmem:[#allocation2 + $0x3] sm:$0x1] %v80
    %s82 = sld [smem:[#allocation3 + $0x2]]
    %s83 = scalar_lea.vmem [#allocation7], %s82
    %v84 = vld [vmem:[%s83] sm:$0x1]
    %85 = vst [vmem:[#allocation2 + $0x4] sm:$0x1] %v84
    %s86 = sld [smem:[#allocation3 + $0x82]]
    %s87 = scalar_lea.vmem [#allocation7], %s86
    %v88 = vld [vmem:[%s87] sm:$0x1]
    %89 = vst [vmem:[#allocation2 + $0x5] sm:$0x1] %v88
    %s90 = sld [smem:[#allocation3 + $0x3]]
    %s91 = scalar_lea.vmem [#allocation7], %s90
    %v92 = vld [vmem:[%s91] sm:$0x1]
    %93 = vst [vmem:[#allocation2 + $0x6] sm:$0x1] %v92
    %s94 = sld [smem:[#allocation3 + $0x83]]
    %s95 = scalar_lea.vmem [#allocation7], %s94
    %v96 = vld [vmem:[%s95] sm:$0x1]
    %97 = vst [vmem:[#allocation2 + $0x7] sm:$0x1] %v96
    %s98 = sld [smem:[#allocation3 + $0x4]]
    %s99 = scalar_lea.vmem [#allocation7], %s98
    %v100 = vld [vmem:[%s99] sm:$0x1]
    %101 = vst [vmem:[#allocation2 + $0x8] sm:$0x1] %v100
    %s102 = sld [smem:[#allocation3 + $0x84]]
    %s103 = scalar_lea.vmem [#allocation7], %s102
    %v104 = vld [vmem:[%s103] sm:$0x1]
    %105 = vst [vmem:[#allocation2 + $0x9] sm:$0x1] %v104
    %s106 = sld [smem:[#allocation3 + $0x5]]
    %s107 = scalar_lea.vmem [#allocation7], %s106
    %v108 = vld [vmem:[%s107] sm:$0x1]
    %109 = vst [vmem:[#allocation2 + $0xa] sm:$0x1] %v108
    %s110 = sld [smem:[#allocation3 + $0x85]]
    %s111 = scalar_lea.vmem [#allocation7], %s110
    %v112 = vld [vmem:[%s111] sm:$0x1]
    %113 = vst [vmem:[#allocation2 + $0xb] sm:$0x1] %v112
    %s114 = sld [smem:[#allocation3 + $0x6]]
    %s115 = scalar_lea.vmem [#allocation7], %s114
    %v116 = vld [vmem:[%s115] sm:$0x1]
    %117 = vst [vmem:[#allocation2 + $0xc] sm:$0x1] %v116
    %s118 = sld [smem:[#allocation3 + $0x86]]
    %s119 = scalar_lea.vmem [#allocation7], %s118
    %v120 = vld [vmem:[%s119] sm:$0x1]
    %121 = vst [vmem:[#allocation2 + $0xd] sm:$0x1] %v120
    %s122 = sld [smem:[#allocation3 + $0x7]]
    %s123 = scalar_lea.vmem [#allocation7], %s122
    %v124 = vld [vmem:[%s123] sm:$0x1]
    %125 = vst [vmem:[#allocation2 + $0xe] sm:$0x1] %v124
    %s126 = sld [smem:[#allocation3 + $0x87]]
    %s127 = scalar_lea.vmem [#allocation7], %s126
    %v128 = vld [vmem:[%s127] sm:$0x1]
    %129 = vst [vmem:[#allocation2 + $0xf] sm:$0x1] %v128
    %v130 = vld [vmem:[#allocation2] sm:$0xff]
    %v131 = vld [vmem:[#allocation2 + $0x8] sm:$0xff]
    %v132 = vld [vmem:[#allocation8] sm:$0xff]
    %v133 = vld [vmem:[#allocation8 + $0x8] sm:$0xff]
    %v134 = vld [vmem:[#allocation8 + $0x10] sm:$0xff]
    %v135 = vld [vmem:[#allocation8 + $0x18] sm:$0xff]
    %v136 = vld [vmem:[%s3] sm:$0x3]
    %v137 = vld [vmem:[%s4] sm:$0x3]
    %vm138 = vcmask 261120
    %v140 = vsel %vm138, %v136, 0
    %142 = vmatprep.subr.mxu0 0.0
    %143 = vmatpush1.msra.mxu0 0.0
    %144 = vmatprep.subr.mxu0 0.0
    %145 = vmatpush1.msra.mxu0 0.0
    %146 = vmatprep.subr.mxu0 0.0
    %147 = vmatpush1.msra.mxu0 0.0
    %148 = vmatprep.subr.mxu0 0.0
    %149 = vmatpush1.msra.mxu0 0.0
    %150 = vmatprep.subr.mxu0 0.0
    %151 = vmatpush1.msra.mxu0 0.0
    %152 = vmatprep.subr.mxu0 0.0
    %153 = vmatpush1.msra.mxu0 0.0
    %154 = vmatprep.subr.mxu0 0.0
    %155 = vmatpush1.msra.mxu0 0.0
    %156 = vmatprep.subr.mxu0 0.0
    %157 = vmatpush1.msra.mxu0 0.0
    %158 = vmatprep.subr.mxu0 0.0
    %159 = vmatpush1.msra.mxu0 0.0
    %160 = vmatprep.subr.mxu0 0.0
    %161 = vmatpush1.msra.mxu0 0.0
    %162 = vmatprep.subr.mxu0 0.0
    %163 = vmatpush1.msra.mxu0 0.0
    %164 = vmatprep.subr.mxu0 0.0
    %165 = vmatpush1.msra.mxu0 0.0
    %166 = vmatprep.subr.mxu0 0.0
    %167 = vmatpush1.msra.mxu0 %v135
    %168 = vmatprep.subr.mxu0 0.0
    %169 = vmatpush1.msra.mxu0 %v134
    %170 = vmatprep.subr.mxu0 0.0
    %171 = vmatpush1.msra.mxu0 %v133
    %172 = vmatprep.subr.mxu0 0.0
    %173 = vmatpush1.msra.mxu0 %v132
    %174 = vmatprep.subr.mxu0 0.0
    %175 = vmatpush2.msra.mxu0 0.0
    %176 = vmatprep.subr.mxu0 0.0
    %177 = vmatpush2.msra.mxu0 0.0
    %178 = vmatprep.subr.mxu0 0.0
    %179 = vmatpush2.msra.mxu0 0.0
    %180 = vmatprep.subr.mxu0 0.0
    %181 = vmatpush2.msra.mxu0 0.0
    %182 = vmatprep.subr.mxu0 0.0
    %183 = vmatpush2.msra.mxu0 0.0
    %184 = vmatprep.subr.mxu0 0.0
    %185 = vmatpush2.msra.mxu0 0.0
    %186 = vmatprep.subr.mxu0 0.0
    %187 = vmatpush2.msra.mxu0 0.0
    %188 = vmatprep.subr.mxu0 0.0
    %189 = vmatpush2.msra.mxu0 0.0
    %190 = vmatprep.subr.mxu0 0.0
    %191 = vmatpush2.msra.mxu0 0.0
    %192 = vmatprep.subr.mxu0 0.0
    %193 = vmatpush2.msra.mxu0 0.0
    %194 = vmatprep.subr.mxu0 0.0
    %195 = vmatpush2.msra.mxu0 0.0
    %196 = vmatprep.subr.mxu0 0.0
    %197 = vmatpush2.msra.mxu0 0.0
    %198 = vmatprep.subr.mxu0 0.0
    %199 = vmatpush2.msra.mxu0 0.0
    %200 = vmatprep.subr.mxu0 0.0
    %201 = vmatpush2.msra.mxu0 0.0
    %202 = vmatprep.subr.mxu0 0.0
    %203 = vmatpush2.msra.mxu0 0.0
    %204 = vmatprep.subr.mxu0 0.0
    %205 = vmatpush2.msra.mxu0 0.0
    %206 = vmatprep.mubr.f32.mxu0 0.0
    %207 = vmatmul.mubr.f32.gmra.mxu0 %v140
    %v208 = vpop.f32.mrf.mxu0
    %v209 = vadd.f32 0.0, %v208
    %v210 = vpop.f32.mrf.mxu0
    %211 = vdwg.mxu0
    %v212 = vadd.f32 %v130, %v209
    %v213 = vxor.u32 %v212, 2147483648
    %v214 = vmul.f32 %v213, 1.442695
    %v215 = vpow.pop %v214
    %v216 = vadd.f32 %v215, 1.0
    %v217 = vrcp.pop %v216
    %v218 = vmul.f32 1.0, %v217
    %v219 = vtanh.pop %v212
    %221 = vrot.lane.b32.xlu0 %v137, 32
    %v222 = vpop.permute.xlu0 %221
    %v224 = vmul.f32 %v218, %v222
    %226 = vrot.lane.b32.xlu0 %v219, 64
    %v227 = vpop.permute.xlu0 %226
    %v229 = vmul.f32 %v218, %v227
    %231 = vrot.lane.b32.xlu0 %v229, 32
    %v232 = vpop.permute.xlu0 %231
    %v234 = vadd.f32 %v224, %v232
    %v235 = vtanh.pop %v234
    %237 = vrot.lane.b32.xlu0 %v235, 64
    %v238 = vpop.permute.xlu0 %237
    %v240 = vmul.f32 %v218, %v238
    %v243 = vunpack.c.l.s4 1983009808
    %v244 = vunpack.c.0.s8 %v243
    %v245 = vlaneseq
    %v246 = vshrl.u32 %v245, 7
    %v247 = vsub.s32 %v244, %v246
    %v248 = vrot.slane %v240, %v247
    %249 = vrot.lane.b32.xlu0 %v248, 32
    %v250 = vpop.permute.xlu0 %249
    %vm252 = vcmask 254976
    %253 = vst.msk [vmem:[%s5] sm:$0x3] %vm252, %v250
    %254 = vrot.lane.b32.xlu0 %v240, 32
    %v255 = vpop.permute.xlu0 %254
    %v256 = vsel %vm138, %v255, 0
    %258 = vmatprep.subr.mxu0 0.0
    %259 = vmatpush1.msra.mxu0 0.0
    %260 = vmatprep.subr.mxu0 0.0
    %261 = vmatpush1.msra.mxu0 0.0
    %262 = vmatprep.subr.mxu0 0.0
    %263 = vmatpush1.msra.mxu0 0.0
    %264 = vmatprep.subr.mxu0 0.0
    %265 = vmatpush1.msra.mxu0 0.0
    %266 = vmatprep.subr.mxu0 0.0
    %267 = vmatpush1.msra.mxu0 0.0
    %268 = vmatprep.subr.mxu0 0.0
    %269 = vmatpush1.msra.mxu0 0.0
    %270 = vmatprep.subr.mxu0 0.0
    %271 = vmatpush1.msra.mxu0 0.0
    %272 = vmatprep.subr.mxu0 0.0
    %273 = vmatpush1.msra.mxu0 0.0
    %274 = vmatprep.subr.mxu0 0.0
    %275 = vmatpush1.msra.mxu0 0.0
    %276 = vmatprep.subr.mxu0 0.0
    %277 = vmatpush1.msra.mxu0 0.0
    %278 = vmatprep.subr.mxu0 0.0
    %279 = vmatpush1.msra.mxu0 0.0
    %280 = vmatprep.subr.mxu0 0.0
    %281 = vmatpush1.msra.mxu0 0.0
    %282 = vmatprep.subr.mxu0 0.0
    %283 = vmatpush1.msra.mxu0 %v135
    %284 = vmatprep.subr.mxu0 0.0
    %285 = vmatpush1.msra.mxu0 %v134
    %286 = vmatprep.subr.mxu0 0.0
    %287 = vmatpush1.msra.mxu0 %v133
    %288 = vmatprep.subr.mxu0 0.0
    %289 = vmatpush1.msra.mxu0 %v132
    %290 = vmatprep.subr.mxu0 0.0
    %291 = vmatpush2.msra.mxu0 0.0
    %292 = vmatprep.subr.mxu0 0.0
    %293 = vmatpush2.msra.mxu0 0.0
    %294 = vmatprep.subr.mxu0 0.0
    %295 = vmatpush2.msra.mxu0 0.0
    %296 = vmatprep.subr.mxu0 0.0
    %297 = vmatpush2.msra.mxu0 0.0
    %298 = vmatprep.subr.mxu0 0.0
    %299 = vmatpush2.msra.mxu0 0.0
    %300 = vmatprep.subr.mxu0 0.0
    %301 = vmatpush2.msra.mxu0 0.0
    %302 = vmatprep.subr.mxu0 0.0
    %303 = vmatpush2.msra.mxu0 0.0
    %304 = vmatprep.subr.mxu0 0.0
    %305 = vmatpush2.msra.mxu0 0.0
    %306 = vmatprep.subr.mxu0 0.0
    %307 = vmatpush2.msra.mxu0 0.0
    %308 = vmatprep.subr.mxu0 0.0
    %309 = vmatpush2.msra.mxu0 0.0
    %310 = vmatprep.subr.mxu0 0.0
    %311 = vmatpush2.msra.mxu0 0.0
    %312 = vmatprep.subr.mxu0 0.0
    %313 = vmatpush2.msra.mxu0 0.0
    %314 = vmatprep.subr.mxu0 0.0
    %315 = vmatpush2.msra.mxu0 0.0
    %316 = vmatprep.subr.mxu0 0.0
    %317 = vmatpush2.msra.mxu0 0.0
    %318 = vmatprep.subr.mxu0 0.0
    %319 = vmatpush2.msra.mxu0 0.0
    %320 = vmatprep.subr.mxu0 0.0
    %321 = vmatpush2.msra.mxu0 0.0
    %322 = vmatprep.mubr.f32.mxu0 0.0
    %323 = vmatmul.mubr.f32.gmra.mxu0 %v256
    %v324 = vpop.f32.mrf.mxu0
    %v325 = vadd.f32 0.0, %v324
    %v326 = vpop.f32.mrf.mxu0
    %327 = vdwg.mxu0
    %v329 = vrot.slane %v325, 6
    %v331 = vadd.f32 %v130, %v329
    %v332 = vxor.u32 %v331, 2147483648
    %v333 = vmul.f32 %v332, 1.442695
    %v334 = vpow.pop %v333
    %v335 = vadd.f32 %v334, 1.0
    %v336 = vrcp.pop %v335
    %v337 = vmul.f32 1.0, %v336
    %v338 = vtanh.pop %v331
    %v340 = vrot.slane %v234, 6
    %v342 = vmul.f32 %v337, %v340
    %344 = vrot.lane.b32.xlu0 %v338, 64
    %v345 = vpop.permute.xlu0 %344
    %v347 = vmul.f32 %v337, %v345
    %349 = vrot.lane.b32.xlu0 %v347, 32
    %v350 = vpop.permute.xlu0 %349
    %v352 = vadd.f32 %v342, %v350
    %v353 = vtanh.pop %v352
    %355 = vrot.lane.b32.xlu0 %v353, 64
    %v356 = vpop.permute.xlu0 %355
    %v358 = vmul.f32 %v337, %v356
    %v361 = vunpack.c.l.s4 1983009808
    %v362 = vunpack.c.0.s8 %v361
    %v363 = vlaneseq
    %v364 = vshrl.u32 %v363, 7
    %v365 = vsub.s32 %v362, %v364
    %v366 = vrot.slane %v358, %v365
    %v367 = vcombine.high %v366, %v366
    %368 = vrot.lane.b32.xlu0 %v367, 64
    %v369 = vpop.permute.xlu0 %368
    %vm371 = vcmask 517376
    %372 = vst.msk [vmem:[%s5] sm:$0x3] %vm371, %v369
    %v373 = vrot.slane %v358, 2
    %374 = vrot.lane.b32.xlu0 %v373, 32
    %v375 = vpop.permute.xlu0 %374
    %v376 = vsel %vm138, %v375, 0
    %378 = vmatprep.subr.mxu0 0.0
    %379 = vmatpush1.msra.mxu0 0.0
    %380 = vmatprep.subr.mxu0 0.0
    %381 = vmatpush1.msra.mxu0 0.0
    %382 = vmatprep.subr.mxu0 0.0
    %383 = vmatpush1.msra.mxu0 0.0
    %384 = vmatprep.subr.mxu0 0.0
    %385 = vmatpush1.msra.mxu0 0.0
    %386 = vmatprep.subr.mxu0 0.0
    %387 = vmatpush1.msra.mxu0 0.0
    %388 = vmatprep.subr.mxu0 0.0
    %389 = vmatpush1.msra.mxu0 0.0
    %390 = vmatprep.subr.mxu0 0.0
    %391 = vmatpush1.msra.mxu0 0.0
    %392 = vmatprep.subr.mxu0 0.0
    %393 = vmatpush1.msra.mxu0 0.0
    %394 = vmatprep.subr.mxu0 0.0
    %395 = vmatpush1.msra.mxu0 0.0
    %396 = vmatprep.subr.mxu0 0.0
    %397 = vmatpush1.msra.mxu0 0.0
    %398 = vmatprep.subr.mxu0 0.0
    %399 = vmatpush1.msra.mxu0 0.0
    %400 = vmatprep.subr.mxu0 0.0
    %401 = vmatpush1.msra.mxu0 0.0
    %402 = vmatprep.subr.mxu0 0.0
    %403 = vmatpush1.msra.mxu0 %v135
    %404 = vmatprep.subr.mxu0 0.0
    %405 = vmatpush1.msra.mxu0 %v134
    %406 = vmatprep.subr.mxu0 0.0
    %407 = vmatpush1.msra.mxu0 %v133
    %408 = vmatprep.subr.mxu0 0.0
    %409 = vmatpush1.msra.mxu0 %v132
    %410 = vmatprep.subr.mxu0 0.0
    %411 = vmatpush2.msra.mxu0 0.0
    %412 = vmatprep.subr.mxu0 0.0
    %413 = vmatpush2.msra.mxu0 0.0
    %414 = vmatprep.subr.mxu0 0.0
    %415 = vmatpush2.msra.mxu0 0.0
    %416 = vmatprep.subr.mxu0 0.0
    %417 = vmatpush2.msra.mxu0 0.0
    %418 = vmatprep.subr.mxu0 0.0
    %419 = vmatpush2.msra.mxu0 0.0
    %420 = vmatprep.subr.mxu0 0.0
    %421 = vmatpush2.msra.mxu0 0.0
    %422 = vmatprep.subr.mxu0 0.0
    %423 = vmatpush2.msra.mxu0 0.0
    %424 = vmatprep.subr.mxu0 0.0
    %425 = vmatpush2.msra.mxu0 0.0
    %426 = vmatprep.subr.mxu0 0.0
    %427 = vmatpush2.msra.mxu0 0.0
    %428 = vmatprep.subr.mxu0 0.0
    %429 = vmatpush2.msra.mxu0 0.0
    %430 = vmatprep.subr.mxu0 0.0
    %431 = vmatpush2.msra.mxu0 0.0
    %432 = vmatprep.subr.mxu0 0.0
    %433 = vmatpush2.msra.mxu0 0.0
    %434 = vmatprep.subr.mxu0 0.0
    %435 = vmatpush2.msra.mxu0 0.0
    %436 = vmatprep.subr.mxu0 0.0
    %437 = vmatpush2.msra.mxu0 0.0
    %438 = vmatprep.subr.mxu0 0.0
    %439 = vmatpush2.msra.mxu0 0.0
    %440 = vmatprep.subr.mxu0 0.0
    %441 = vmatpush2.msra.mxu0 0.0
    %442 = vmatprep.mubr.f32.mxu0 0.0
    %443 = vmatmul.mubr.f32.gmra.mxu0 %v376
    %v444 = vpop.f32.mrf.mxu0
    %v445 = vadd.f32 0.0, %v444
    %v446 = vpop.f32.mrf.mxu0
    %447 = vdwg.mxu0
    %v449 = vrot.slane %v445, 4
    %v451 = vadd.f32 %v130, %v449
    %v452 = vxor.u32 %v451, 2147483648
    %v453 = vmul.f32 %v452, 1.442695
    %v454 = vpow.pop %v453
    %v455 = vadd.f32 %v454, 1.0
    %v456 = vrcp.pop %v455
    %v457 = vmul.f32 1.0, %v456
    %v458 = vtanh.pop %v451
    %v460 = vrot.slane %v352, 6
    %v462 = vmul.f32 %v457, %v460
    %464 = vrot.lane.b32.xlu0 %v458, 64
    %v465 = vpop.permute.xlu0 %464
    %v467 = vmul.f32 %v457, %v465
    %469 = vrot.lane.b32.xlu0 %v467, 32
    %v470 = vpop.permute.xlu0 %469
    %v472 = vadd.f32 %v462, %v470
    %v473 = vtanh.pop %v472
    %475 = vrot.lane.b32.xlu0 %v473, 64
    %v476 = vpop.permute.xlu0 %475
    %v478 = vmul.f32 %v457, %v476
    %v480 = vcombine.high %v478, %v478
    %v482 = vunpack.c.l.s4 1983009808
    %v483 = vunpack.c.0.s8 %v482
    %v484 = vlaneseq
    %v485 = vshrl.u32 %v484, 7
    %v486 = vsub.s32 %v483, %v485
    %v487 = vrot.slane %v480, %v486
    %488 = vrot.lane.b32.xlu0 %v487, 96
    %v489 = vpop.permute.xlu0 %488
    %vm491 = vcmask 779776
    %492 = vst.msk [vmem:[%s5] sm:$0x3] %vm491, %v489
    %v493 = vrot.slane %v478, 4
    %494 = vrot.lane.b32.xlu0 %v493, 32
    %v495 = vpop.permute.xlu0 %494
    %v496 = vsel %vm138, %v495, 0
    %498 = vmatprep.subr.mxu0 0.0
    %499 = vmatpush1.msra.mxu0 0.0
    %500 = vmatprep.subr.mxu0 0.0
    %501 = vmatpush1.msra.mxu0 0.0
    %502 = vmatprep.subr.mxu0 0.0
    %503 = vmatpush1.msra.mxu0 0.0
    %504 = vmatprep.subr.mxu0 0.0
    %505 = vmatpush1.msra.mxu0 0.0
    %506 = vmatprep.subr.mxu0 0.0
    %507 = vmatpush1.msra.mxu0 0.0
    %508 = vmatprep.subr.mxu0 0.0
    %509 = vmatpush1.msra.mxu0 0.0
    %510 = vmatprep.subr.mxu0 0.0
    %511 = vmatpush1.msra.mxu0 0.0
    %512 = vmatprep.subr.mxu0 0.0
    %513 = vmatpush1.msra.mxu0 0.0
    %514 = vmatprep.subr.mxu0 0.0
    %515 = vmatpush1.msra.mxu0 0.0
    %516 = vmatprep.subr.mxu0 0.0
    %517 = vmatpush1.msra.mxu0 0.0
    %518 = vmatprep.subr.mxu0 0.0
    %519 = vmatpush1.msra.mxu0 0.0
    %520 = vmatprep.subr.mxu0 0.0
    %521 = vmatpush1.msra.mxu0 0.0
    %522 = vmatprep.subr.mxu0 0.0
    %523 = vmatpush1.msra.mxu0 %v135
    %524 = vmatprep.subr.mxu0 0.0
    %525 = vmatpush1.msra.mxu0 %v134
    %526 = vmatprep.subr.mxu0 0.0
    %527 = vmatpush1.msra.mxu0 %v133
    %528 = vmatprep.subr.mxu0 0.0
    %529 = vmatpush1.msra.mxu0 %v132
    %530 = vmatprep.subr.mxu0 0.0
    %531 = vmatpush2.msra.mxu0 0.0
    %532 = vmatprep.subr.mxu0 0.0
    %533 = vmatpush2.msra.mxu0 0.0
    %534 = vmatprep.subr.mxu0 0.0
    %535 = vmatpush2.msra.mxu0 0.0
    %536 = vmatprep.subr.mxu0 0.0
    %537 = vmatpush2.msra.mxu0 0.0
    %538 = vmatprep.subr.mxu0 0.0
    %539 = vmatpush2.msra.mxu0 0.0
    %540 = vmatprep.subr.mxu0 0.0
    %541 = vmatpush2.msra.mxu0 0.0
    %542 = vmatprep.subr.mxu0 0.0
    %543 = vmatpush2.msra.mxu0 0.0
    %544 = vmatprep.subr.mxu0 0.0
    %545 = vmatpush2.msra.mxu0 0.0
    %546 = vmatprep.subr.mxu0 0.0
    %547 = vmatpush2.msra.mxu0 0.0
    %548 = vmatprep.subr.mxu0 0.0
    %549 = vmatpush2.msra.mxu0 0.0
    %550 = vmatprep.subr.mxu0 0.0
    %551 = vmatpush2.msra.mxu0 0.0
    %552 = vmatprep.subr.mxu0 0.0
    %553 = vmatpush2.msra.mxu0 0.0
    %554 = vmatprep.subr.mxu0 0.0
    %555 = vmatpush2.msra.mxu0 0.0
    %556 = vmatprep.subr.mxu0 0.0
    %557 = vmatpush2.msra.mxu0 0.0
    %558 = vmatprep.subr.mxu0 0.0
    %559 = vmatpush2.msra.mxu0 0.0
    %560 = vmatprep.subr.mxu0 0.0
    %561 = vmatpush2.msra.mxu0 0.0
    %562 = vmatprep.mubr.f32.mxu0 0.0
    %563 = vmatmul.mubr.f32.gmra.mxu0 %v496
    %v564 = vpop.f32.mrf.mxu0
    %v565 = vadd.f32 0.0, %v564
    %v566 = vpop.f32.mrf.mxu0
    %567 = vdwg.mxu0
    %v569 = vrot.slane %v565, 2
    %v571 = vadd.f32 %v130, %v569
    %v572 = vxor.u32 %v571, 2147483648
    %v573 = vmul.f32 %v572, 1.442695
    %v574 = vpow.pop %v573
    %v575 = vadd.f32 %v574, 1.0
    %v576 = vrcp.pop %v575
    %v577 = vmul.f32 1.0, %v576
    %v578 = vtanh.pop %v571
    %v580 = vrot.slane %v472, 6
    %v582 = vmul.f32 %v577, %v580
    %584 = vrot.lane.b32.xlu0 %v578, 64
    %v585 = vpop.permute.xlu0 %584
    %v587 = vmul.f32 %v577, %v585
    %589 = vrot.lane.b32.xlu0 %v587, 32
    %v590 = vpop.permute.xlu0 %589
    %v592 = vadd.f32 %v582, %v590
    %v593 = vtanh.pop %v592
    %595 = vrot.lane.b32.xlu0 %v593, 64
    %v596 = vpop.permute.xlu0 %595
    %v598 = vmul.f32 %v577, %v596
    %v600 = vcombine.high %v598, %v598
    %v602 = vunpack.c.l.s4 1983009808
    %v603 = vunpack.c.0.s8 %v602
    %v604 = vlaneseq
    %v605 = vshrl.u32 %v604, 7
    %v606 = vsub.s32 %v603, %v605
    %v607 = vrot.slane %v600, %v606
    %v608 = vcombine.high %v607, %v607
    %vm610 = vcmask 1042176
    %611 = vst.msk [vmem:[%s5] sm:$0x3] %vm610, %v608
    %v612 = vrot.slane %v598, 6
    %613 = vrot.lane.b32.xlu0 %v612, 32
    %v614 = vpop.permute.xlu0 %613
    %v615 = vsel %vm138, %v614, 0
    %617 = vmatprep.subr.mxu0 0.0
    %618 = vmatpush1.msra.mxu0 0.0
    %619 = vmatprep.subr.mxu0 0.0
    %620 = vmatpush1.msra.mxu0 0.0
    %621 = vmatprep.subr.mxu0 0.0
    %622 = vmatpush1.msra.mxu0 0.0
    %623 = vmatprep.subr.mxu0 0.0
    %624 = vmatpush1.msra.mxu0 0.0
    %625 = vmatprep.subr.mxu0 0.0
    %626 = vmatpush1.msra.mxu0 0.0
    %627 = vmatprep.subr.mxu0 0.0
    %628 = vmatpush1.msra.mxu0 0.0
    %629 = vmatprep.subr.mxu0 0.0
    %630 = vmatpush1.msra.mxu0 0.0
    %631 = vmatprep.subr.mxu0 0.0
    %632 = vmatpush1.msra.mxu0 0.0
    %633 = vmatprep.subr.mxu0 0.0
    %634 = vmatpush1.msra.mxu0 0.0
    %635 = vmatprep.subr.mxu0 0.0
    %636 = vmatpush1.msra.mxu0 0.0
    %637 = vmatprep.subr.mxu0 0.0
    %638 = vmatpush1.msra.mxu0 0.0
    %639 = vmatprep.subr.mxu0 0.0
    %640 = vmatpush1.msra.mxu0 0.0
    %641 = vmatprep.subr.mxu0 0.0
    %642 = vmatpush1.msra.mxu0 %v135
    %643 = vmatprep.subr.mxu0 0.0
    %644 = vmatpush1.msra.mxu0 %v134
    %645 = vmatprep.subr.mxu0 0.0
    %646 = vmatpush1.msra.mxu0 %v133
    %647 = vmatprep.subr.mxu0 0.0
    %648 = vmatpush1.msra.mxu0 %v132
    %649 = vmatprep.subr.mxu0 0.0
    %650 = vmatpush2.msra.mxu0 0.0
    %651 = vmatprep.subr.mxu0 0.0
    %652 = vmatpush2.msra.mxu0 0.0
    %653 = vmatprep.subr.mxu0 0.0
    %654 = vmatpush2.msra.mxu0 0.0
    %655 = vmatprep.subr.mxu0 0.0
    %656 = vmatpush2.msra.mxu0 0.0
    %657 = vmatprep.subr.mxu0 0.0
    %658 = vmatpush2.msra.mxu0 0.0
    %659 = vmatprep.subr.mxu0 0.0
    %660 = vmatpush2.msra.mxu0 0.0
    %661 = vmatprep.subr.mxu0 0.0
    %662 = vmatpush2.msra.mxu0 0.0
    %663 = vmatprep.subr.mxu0 0.0
    %664 = vmatpush2.msra.mxu0 0.0
    %665 = vmatprep.subr.mxu0 0.0
    %666 = vmatpush2.msra.mxu0 0.0
    %667 = vmatprep.subr.mxu0 0.0
    %668 = vmatpush2.msra.mxu0 0.0
    %669 = vmatprep.subr.mxu0 0.0
    %670 = vmatpush2.msra.mxu0 0.0
    %671 = vmatprep.subr.mxu0 0.0
    %672 = vmatpush2.msra.mxu0 0.0
    %673 = vmatprep.subr.mxu0 0.0
    %674 = vmatpush2.msra.mxu0 0.0
    %675 = vmatprep.subr.mxu0 0.0
    %676 = vmatpush2.msra.mxu0 0.0
    %677 = vmatprep.subr.mxu0 0.0
    %678 = vmatpush2.msra.mxu0 0.0
    %679 = vmatprep.subr.mxu0 0.0
    %680 = vmatpush2.msra.mxu0 0.0
    %681 = vmatprep.mubr.f32.mxu0 0.0
    %682 = vmatmul.mubr.f32.gmra.mxu0 %v615
    %v683 = vpop.f32.mrf.mxu0
    %v684 = vadd.f32 0.0, %v683
    %v685 = vpop.f32.mrf.mxu0
    %686 = vdwg.mxu0
    %v687 = vadd.f32 %v131, %v684
    %v688 = vxor.u32 %v687, 2147483648
    %v689 = vmul.f32 %v688, 1.442695
    %v690 = vpow.pop %v689
    %v691 = vadd.f32 %v690, 1.0
    %v692 = vrcp.pop %v691
    %v693 = vmul.f32 1.0, %v692
    %v694 = vtanh.pop %v687
    %v696 = vrot.slane %v592, 6
    %v698 = vmul.f32 %v693, %v696
    %700 = vrot.lane.b32.xlu0 %v694, 64
    %v701 = vpop.permute.xlu0 %700
    %v703 = vmul.f32 %v693, %v701
    %705 = vrot.lane.b32.xlu0 %v703, 32
    %v706 = vpop.permute.xlu0 %705
    %v708 = vadd.f32 %v698, %v706
    %v709 = vtanh.pop %v708
    %711 = vrot.lane.b32.xlu0 %v709, 64
    %v712 = vpop.permute.xlu0 %711
    %v714 = vmul.f32 %v693, %v712
    %v717 = vunpack.c.l.s4 1983009808
    %v718 = vunpack.c.0.s8 %v717
    %v719 = vlaneseq
    %v720 = vshrl.u32 %v719, 7
    %v721 = vsub.s32 %v718, %v720
    %v722 = vrot.slane %v714, %v721
    %723 = vrot.lane.b32.xlu0 %v722, 32
    %v724 = vpop.permute.xlu0 %723
    %726 = vst.msk [vmem:[%s5 + $0x2] sm:$0x3] %vm252, %v724
    %727 = vrot.lane.b32.xlu0 %v714, 32
    %v728 = vpop.permute.xlu0 %727
    %v729 = vsel %vm138, %v728, 0
    %731 = vmatprep.subr.mxu0 0.0
    %732 = vmatpush1.msra.mxu0 0.0
    %733 = vmatprep.subr.mxu0 0.0
    %734 = vmatpush1.msra.mxu0 0.0
    %735 = vmatprep.subr.mxu0 0.0
    %736 = vmatpush1.msra.mxu0 0.0
    %737 = vmatprep.subr.mxu0 0.0
    %738 = vmatpush1.msra.mxu0 0.0
    %739 = vmatprep.subr.mxu0 0.0
    %740 = vmatpush1.msra.mxu0 0.0
    %741 = vmatprep.subr.mxu0 0.0
    %742 = vmatpush1.msra.mxu0 0.0
    %743 = vmatprep.subr.mxu0 0.0
    %744 = vmatpush1.msra.mxu0 0.0
    %745 = vmatprep.subr.mxu0 0.0
    %746 = vmatpush1.msra.mxu0 0.0
    %747 = vmatprep.subr.mxu0 0.0
    %748 = vmatpush1.msra.mxu0 0.0
    %749 = vmatprep.subr.mxu0 0.0
    %750 = vmatpush1.msra.mxu0 0.0
    %751 = vmatprep.subr.mxu0 0.0
    %752 = vmatpush1.msra.mxu0 0.0
    %753 = vmatprep.subr.mxu0 0.0
    %754 = vmatpush1.msra.mxu0 0.0
    %755 = vmatprep.subr.mxu0 0.0
    %756 = vmatpush1.msra.mxu0 %v135
    %757 = vmatprep.subr.mxu0 0.0
    %758 = vmatpush1.msra.mxu0 %v134
    %759 = vmatprep.subr.mxu0 0.0
    %760 = vmatpush1.msra.mxu0 %v133
    %761 = vmatprep.subr.mxu0 0.0
    %762 = vmatpush1.msra.mxu0 %v132
    %763 = vmatprep.subr.mxu0 0.0
    %764 = vmatpush2.msra.mxu0 0.0
    %765 = vmatprep.subr.mxu0 0.0
    %766 = vmatpush2.msra.mxu0 0.0
    %767 = vmatprep.subr.mxu0 0.0
    %768 = vmatpush2.msra.mxu0 0.0
    %769 = vmatprep.subr.mxu0 0.0
    %770 = vmatpush2.msra.mxu0 0.0
    %771 = vmatprep.subr.mxu0 0.0
    %772 = vmatpush2.msra.mxu0 0.0
    %773 = vmatprep.subr.mxu0 0.0
    %774 = vmatpush2.msra.mxu0 0.0
    %775 = vmatprep.subr.mxu0 0.0
    %776 = vmatpush2.msra.mxu0 0.0
    %777 = vmatprep.subr.mxu0 0.0
    %778 = vmatpush2.msra.mxu0 0.0
    %779 = vmatprep.subr.mxu0 0.0
    %780 = vmatpush2.msra.mxu0 0.0
    %781 = vmatprep.subr.mxu0 0.0
    %782 = vmatpush2.msra.mxu0 0.0
    %783 = vmatprep.subr.mxu0 0.0
    %784 = vmatpush2.msra.mxu0 0.0
    %785 = vmatprep.subr.mxu0 0.0
    %786 = vmatpush2.msra.mxu0 0.0
    %787 = vmatprep.subr.mxu0 0.0
    %788 = vmatpush2.msra.mxu0 0.0
    %789 = vmatprep.subr.mxu0 0.0
    %790 = vmatpush2.msra.mxu0 0.0
    %791 = vmatprep.subr.mxu0 0.0
    %792 = vmatpush2.msra.mxu0 0.0
    %793 = vmatprep.subr.mxu0 0.0
    %794 = vmatpush2.msra.mxu0 0.0
    %795 = vmatprep.mubr.f32.mxu0 0.0
    %796 = vmatmul.mubr.f32.gmra.mxu0 %v729
    %v797 = vpop.f32.mrf.mxu0
    %v798 = vadd.f32 0.0, %v797
    %v799 = vpop.f32.mrf.mxu0
    %800 = vdwg.mxu0
    %v802 = vrot.slane %v798, 6
    %v804 = vadd.f32 %v131, %v802
    %v805 = vxor.u32 %v804, 2147483648
    %v806 = vmul.f32 %v805, 1.442695
    %v807 = vpow.pop %v806
    %v808 = vadd.f32 %v807, 1.0
    %v809 = vrcp.pop %v808
    %v810 = vmul.f32 1.0, %v809
    %v811 = vtanh.pop %v804
    %v813 = vrot.slane %v708, 6
    %v815 = vmul.f32 %v810, %v813
    %817 = vrot.lane.b32.xlu0 %v811, 64
    %v818 = vpop.permute.xlu0 %817
    %v820 = vmul.f32 %v810, %v818
    %822 = vrot.lane.b32.xlu0 %v820, 32
    %v823 = vpop.permute.xlu0 %822
    %v825 = vadd.f32 %v815, %v823
    %v826 = vtanh.pop %v825
    %828 = vrot.lane.b32.xlu0 %v826, 64
    %v829 = vpop.permute.xlu0 %828
    %v831 = vmul.f32 %v810, %v829
    %v834 = vunpack.c.l.s4 1983009808
    %v835 = vunpack.c.0.s8 %v834
    %v836 = vlaneseq
    %v837 = vshrl.u32 %v836, 7
    %v838 = vsub.s32 %v835, %v837
    %v839 = vrot.slane %v831, %v838
    %v840 = vcombine.high %v839, %v839
    %841 = vrot.lane.b32.xlu0 %v840, 64
    %v842 = vpop.permute.xlu0 %841
    %844 = vst.msk [vmem:[%s5 + $0x2] sm:$0x3] %vm371, %v842
    %v845 = vrot.slane %v831, 2
    %846 = vrot.lane.b32.xlu0 %v845, 32
    %v847 = vpop.permute.xlu0 %846
    %v848 = vsel %vm138, %v847, 0
    %850 = vmatprep.subr.mxu0 0.0
    %851 = vmatpush1.msra.mxu0 0.0
    %852 = vmatprep.subr.mxu0 0.0
    %853 = vmatpush1.msra.mxu0 0.0
    %854 = vmatprep.subr.mxu0 0.0
    %855 = vmatpush1.msra.mxu0 0.0
    %856 = vmatprep.subr.mxu0 0.0
    %857 = vmatpush1.msra.mxu0 0.0
    %858 = vmatprep.subr.mxu0 0.0
    %859 = vmatpush1.msra.mxu0 0.0
    %860 = vmatprep.subr.mxu0 0.0
    %861 = vmatpush1.msra.mxu0 0.0
    %862 = vmatprep.subr.mxu0 0.0
    %863 = vmatpush1.msra.mxu0 0.0
    %864 = vmatprep.subr.mxu0 0.0
    %865 = vmatpush1.msra.mxu0 0.0
    %866 = vmatprep.subr.mxu0 0.0
    %867 = vmatpush1.msra.mxu0 0.0
    %868 = vmatprep.subr.mxu0 0.0
    %869 = vmatpush1.msra.mxu0 0.0
    %870 = vmatprep.subr.mxu0 0.0
    %871 = vmatpush1.msra.mxu0 0.0
    %872 = vmatprep.subr.mxu0 0.0
    %873 = vmatpush1.msra.mxu0 0.0
    %874 = vmatprep.subr.mxu0 0.0
    %875 = vmatpush1.msra.mxu0 %v135
    %876 = vmatprep.subr.mxu0 0.0
    %877 = vmatpush1.msra.mxu0 %v134
    %878 = vmatprep.subr.mxu0 0.0
    %879 = vmatpush1.msra.mxu0 %v133
    %880 = vmatprep.subr.mxu0 0.0
    %881 = vmatpush1.msra.mxu0 %v132
    %882 = vmatprep.subr.mxu0 0.0
    %883 = vmatpush2.msra.mxu0 0.0
    %884 = vmatprep.subr.mxu0 0.0
    %885 = vmatpush2.msra.mxu0 0.0
    %886 = vmatprep.subr.mxu0 0.0
    %887 = vmatpush2.msra.mxu0 0.0
    %888 = vmatprep.subr.mxu0 0.0
    %889 = vmatpush2.msra.mxu0 0.0
    %890 = vmatprep.subr.mxu0 0.0
    %891 = vmatpush2.msra.mxu0 0.0
    %892 = vmatprep.subr.mxu0 0.0
    %893 = vmatpush2.msra.mxu0 0.0
    %894 = vmatprep.subr.mxu0 0.0
    %895 = vmatpush2.msra.mxu0 0.0
    %896 = vmatprep.subr.mxu0 0.0
    %897 = vmatpush2.msra.mxu0 0.0
    %898 = vmatprep.subr.mxu0 0.0
    %899 = vmatpush2.msra.mxu0 0.0
    %900 = vmatprep.subr.mxu0 0.0
    %901 = vmatpush2.msra.mxu0 0.0
    %902 = vmatprep.subr.mxu0 0.0
    %903 = vmatpush2.msra.mxu0 0.0
    %904 = vmatprep.subr.mxu0 0.0
    %905 = vmatpush2.msra.mxu0 0.0
    %906 = vmatprep.subr.mxu0 0.0
    %907 = vmatpush2.msra.mxu0 0.0
    %908 = vmatprep.subr.mxu0 0.0
    %909 = vmatpush2.msra.mxu0 0.0
    %910 = vmatprep.subr.mxu0 0.0
    %911 = vmatpush2.msra.mxu0 0.0
    %912 = vmatprep.subr.mxu0 0.0
    %913 = vmatpush2.msra.mxu0 0.0
    %914 = vmatprep.mubr.f32.mxu0 0.0
    %915 = vmatmul.mubr.f32.gmra.mxu0 %v848
    %v916 = vpop.f32.mrf.mxu0
    %v917 = vadd.f32 0.0, %v916
    %v918 = vpop.f32.mrf.mxu0
    %919 = vdwg.mxu0
    %v921 = vrot.slane %v917, 4
    %v923 = vadd.f32 %v131, %v921
    %v924 = vxor.u32 %v923, 2147483648
    %v925 = vmul.f32 %v924, 1.442695
    %v926 = vpow.pop %v925
    %v927 = vadd.f32 %v926, 1.0
    %v928 = vrcp.pop %v927
    %v929 = vmul.f32 1.0, %v928
    %v930 = vtanh.pop %v923
    %v932 = vrot.slane %v825, 6
    %v934 = vmul.f32 %v929, %v932
    %936 = vrot.lane.b32.xlu0 %v930, 64
    %v937 = vpop.permute.xlu0 %936
    %v939 = vmul.f32 %v929, %v937
    %941 = vrot.lane.b32.xlu0 %v939, 32
    %v942 = vpop.permute.xlu0 %941
    %v944 = vadd.f32 %v934, %v942
    %v945 = vtanh.pop %v944
    %947 = vrot.lane.b32.xlu0 %v945, 64
    %v948 = vpop.permute.xlu0 %947
    %v950 = vmul.f32 %v929, %v948
    %v952 = vcombine.high %v950, %v950
    %v954 = vunpack.c.l.s4 1983009808
    %v955 = vunpack.c.0.s8 %v954
    %v956 = vlaneseq
    %v957 = vshrl.u32 %v956, 7
    %v958 = vsub.s32 %v955, %v957
    %v959 = vrot.slane %v952, %v958
    %960 = vrot.lane.b32.xlu0 %v959, 96
    %v961 = vpop.permute.xlu0 %960
    %963 = vst.msk [vmem:[%s5 + $0x2] sm:$0x3] %vm491, %v961
    %v964 = vrot.slane %v950, 4
    %965 = vrot.lane.b32.xlu0 %v964, 32
    %v966 = vpop.permute.xlu0 %965
    %v967 = vsel %vm138, %v966, 0
    %969 = vmatprep.subr.mxu0 0.0
    %970 = vmatpush1.msra.mxu0 0.0
    %971 = vmatprep.subr.mxu0 0.0
    %972 = vmatpush1.msra.mxu0 0.0
    %973 = vmatprep.subr.mxu0 0.0
    %974 = vmatpush1.msra.mxu0 0.0
    %975 = vmatprep.subr.mxu0 0.0
    %976 = vmatpush1.msra.mxu0 0.0
    %977 = vmatprep.subr.mxu0 0.0
    %978 = vmatpush1.msra.mxu0 0.0
    %979 = vmatprep.subr.mxu0 0.0
    %980 = vmatpush1.msra.mxu0 0.0
    %981 = vmatprep.subr.mxu0 0.0
    %982 = vmatpush1.msra.mxu0 0.0
    %983 = vmatprep.subr.mxu0 0.0
    %984 = vmatpush1.msra.mxu0 0.0
    %985 = vmatprep.subr.mxu0 0.0
    %986 = vmatpush1.msra.mxu0 0.0
    %987 = vmatprep.subr.mxu0 0.0
    %988 = vmatpush1.msra.mxu0 0.0
    %989 = vmatprep.subr.mxu0 0.0
    %990 = vmatpush1.msra.mxu0 0.0
    %991 = vmatprep.subr.mxu0 0.0
    %992 = vmatpush1.msra.mxu0 0.0
    %993 = vmatprep.subr.mxu0 0.0
    %994 = vmatpush1.msra.mxu0 %v135
    %995 = vmatprep.subr.mxu0 0.0
    %996 = vmatpush1.msra.mxu0 %v134
    %997 = vmatprep.subr.mxu0 0.0
    %998 = vmatpush1.msra.mxu0 %v133
    %999 = vmatprep.subr.mxu0 0.0
    %1000 = vmatpush1.msra.mxu0 %v132
    %1001 = vmatprep.subr.mxu0 0.0
    %1002 = vmatpush2.msra.mxu0 0.0
    %1003 = vmatprep.subr.mxu0 0.0
    %1004 = vmatpush2.msra.mxu0 0.0
    %1005 = vmatprep.subr.mxu0 0.0
    %1006 = vmatpush2.msra.mxu0 0.0
    %1007 = vmatprep.subr.mxu0 0.0
    %1008 = vmatpush2.msra.mxu0 0.0
    %1009 = vmatprep.subr.mxu0 0.0
    %1010 = vmatpush2.msra.mxu0 0.0
    %1011 = vmatprep.subr.mxu0 0.0
    %1012 = vmatpush2.msra.mxu0 0.0
    %1013 = vmatprep.subr.mxu0 0.0
    %1014 = vmatpush2.msra.mxu0 0.0
    %1015 = vmatprep.subr.mxu0 0.0
    %1016 = vmatpush2.msra.mxu0 0.0
    %1017 = vmatprep.subr.mxu0 0.0
    %1018 = vmatpush2.msra.mxu0 0.0
    %1019 = vmatprep.subr.mxu0 0.0
    %1020 = vmatpush2.msra.mxu0 0.0
    %1021 = vmatprep.subr.mxu0 0.0
    %1022 = vmatpush2.msra.mxu0 0.0
    %1023 = vmatprep.subr.mxu0 0.0
    %1024 = vmatpush2.msra.mxu0 0.0
    %1025 = vmatprep.subr.mxu0 0.0
    %1026 = vmatpush2.msra.mxu0 0.0
    %1027 = vmatprep.subr.mxu0 0.0
    %1028 = vmatpush2.msra.mxu0 0.0
    %1029 = vmatprep.subr.mxu0 0.0
    %1030 = vmatpush2.msra.mxu0 0.0
    %1031 = vmatprep.subr.mxu0 0.0
    %1032 = vmatpush2.msra.mxu0 0.0
    %1033 = vmatprep.mubr.f32.mxu0 0.0
    %1034 = vmatmul.mubr.f32.gmra.mxu0 %v967
    %v1035 = vpop.f32.mrf.mxu0
    %v1036 = vadd.f32 0.0, %v1035
    %v1037 = vpop.f32.mrf.mxu0
    %1038 = vdwg.mxu0
    %v1040 = vrot.slane %v1036, 2
    %v1042 = vadd.f32 %v131, %v1040
    %v1043 = vxor.u32 %v1042, 2147483648
    %v1044 = vmul.f32 %v1043, 1.442695
    %v1045 = vpow.pop %v1044
    %v1046 = vadd.f32 %v1045, 1.0
    %v1047 = vrcp.pop %v1046
    %v1048 = vmul.f32 1.0, %v1047
    %v1049 = vtanh.pop %v1042
    %v1051 = vrot.slane %v944, 6
    %v1053 = vmul.f32 %v1048, %v1051
    %1055 = vrot.lane.b32.xlu0 %v1049, 64
    %v1056 = vpop.permute.xlu0 %1055
    %v1058 = vmul.f32 %v1048, %v1056
    %1060 = vrot.lane.b32.xlu0 %v1058, 32
    %v1061 = vpop.permute.xlu0 %1060
    %v1063 = vadd.f32 %v1053, %v1061
    %v1064 = vtanh.pop %v1063
    %1066 = vrot.lane.b32.xlu0 %v1064, 64
    %v1067 = vpop.permute.xlu0 %1066
    %v1069 = vmul.f32 %v1048, %v1067
    %v1071 = vcombine.high %v1069, %v1069
    %v1073 = vunpack.c.l.s4 1983009808
    %v1074 = vunpack.c.0.s8 %v1073
    %v1075 = vlaneseq
    %v1076 = vshrl.u32 %v1075, 7
    %v1077 = vsub.s32 %v1074, %v1076
    %v1078 = vrot.slane %v1071, %v1077
    %v1079 = vcombine.high %v1078, %v1078
    %1081 = vst.msk [vmem:[%s5 + $0x2] sm:$0x3] %vm610, %v1079
    %1082 = vrot.lane.b32.xlu0 %v1069, 32
    %v1083 = vpop.permute.xlu0 %1082
    %vm1085 = vcmask 261126
    %1086 = vst.msk [vmem:[#allocation10 - $0x6] sm:$0xc0] %vm1085, %v1083
    %1088 = vrot.lane.b32.xlu0 %v1063, 96
    %v1089 = vpop.permute.xlu0 %1088
    %1091 = vst.msk [vmem:[#allocation11 - $0x6] sm:$0xc0] %vm1085, %v1089
    // Predicated region
    $region34: #{encoder_forward.1} parent=1 // pred_check
      _
    $region35: #{encoder_forward.1} parent=1 // pred_check_branch
      %1093 = sbr.rel (0) target = $region37
    $region36: #{encoder_forward.1} parent=1 // pred_region
      _
    $region37: #{encoder_forward.1} parent=1 // pred_fallthru
      _
    // Predicated region
    $region38: #{encoder_forward.1} parent=1 // pred_check
      _
    $region39: #{encoder_forward.1} parent=1 // pred_check_branch
      %1095 = sbr.rel (0) target = $region41
    $region40: #{encoder_forward.1} parent=1 // pred_region
      %s1097 = ssub.s32 32, 32
      %1098 = vsyncadd [#allocation5], %s1097
      %s1100 = sshll.u32 [#allocation10], 4
      %s1101 = int_to_ptr.vmem [resolvable:$true] %s1100
      %1103 = dma.vmem_to_hbm [thread:$0]  %s1101, 32, %s6, [#allocation5]
    $region41: #{encoder_forward.1} parent=1 // pred_fallthru
      _
    // Predicated region
    $region42: #{encoder_forward.1} parent=1 // pred_check
      _
    $region43: #{encoder_forward.1} parent=1 // pred_check_branch
      %1105 = sbr.rel (0) target = $region45
    $region44: #{encoder_forward.1} parent=1 // pred_region
      %s1107 = ssub.s32 32, 32
      %1108 = vsyncadd [#allocation12], %s1107
      %s1110 = sshll.u32 [#allocation11], 4
      %s1111 = int_to_ptr.vmem [resolvable:$true] %s1110
      %1113 = dma.vmem_to_hbm [thread:$0]  %s1111, 32, %s7, [#allocation12]
    $region45: #{encoder_forward.1} parent=1 // pred_fallthru
      _
    // Predicated region
    $region46: #{encoder_forward.1} parent=1 // pred_check
      _
    $region47: #{encoder_forward.1} parent=1 // pred_check_branch
      %1115 = sbr.rel (0) target = $region49
    $region48: #{encoder_forward.1} parent=1 // pred_region
      _
    $region49: #{encoder_forward.1} parent=1 // pred_fallthru
      _
    // Predicated region
    $region50: #{encoder_forward.1} parent=1 // pred_check
      _
    $region51: #{encoder_forward.1} parent=1 // pred_check_branch
      %1117 = sbr.rel (0) target = $region53
    $region52: #{encoder_forward.1} parent=1 // pred_region
      %1118 = dma.done [#allocation5], 32
    $region53: #{encoder_forward.1} parent=1 // pred_fallthru
      _
    // Predicated region
    $region54: #{encoder_forward.1} parent=1 // pred_check
      _
    $region55: #{encoder_forward.1} parent=1 // pred_check_branch
      %1120 = sbr.rel (0) target = $region57
    $region56: #{encoder_forward.1} parent=1 // pred_region
      %1121 = dma.done [#allocation12], 32
    $region57: #{encoder_forward.1} parent=1 // pred_fallthru
      _
    %1122 = vsyncpa [#allocation4], 1
    %1123 = vsyncpa [#allocation9], 1
    %1124 = vsyncpa [#allocation5], 1
    %1125 = vsyncpa [#allocation12], 1
    %1126 = vsyncpa [#allocation6], 1

</llo_original>
